<compile_context>
chip_gen: v5e
topology: v5e:2x2
jax: 0.10.0
libtpu: 0.0.40
codegen_flags: <defaults>
</compile_context>

<pallas_src>
import jax
import jax.numpy as jnp
from jax.experimental import pallas as pl
from jax.experimental.pallas import tpu as pltpu

B, L, D, H, NLAYERS = 2, 8, 32, 4, 2      # batch, seq, width, heads, layers
HD = D // H                               # head dim
EMB = 32                                  # text_projection output dim
BL = B * L                                # batch folded into sublanes
EPS = 1e-5
NEG_INF = -1e30


def _layernorm(x, g, b):
    """One-pass LN: mean and E[x^2] reduce independently (overlapping XLU ops)."""
    inv_n = 1.0 / x.shape[-1]
    mu = jnp.sum(x, axis=-1, keepdims=True) * inv_n
    ex2 = jnp.sum(x * x, axis=-1, keepdims=True) * inv_n
    var = ex2 - mu * mu
    return (x - mu) * jax.lax.rsqrt(var + EPS) * g + b


# ------------------------------------------------------------------ kernel --
def fused_text_encoder_kernel(
        idx_ref,                        # SMEM (B,) int32: EOT position per row
        x0_ref, pe_ref, mask_ref,       # (BL,D), (BL,D), (BL,BL)
        wqkv_ref,                       # (NLAYERS, D, 3D)  fused QKV (Q scaled)
        wo_ref,                         # (NLAYERS, D, D)
        w1_ref,                         # (NLAYERS, D, 4D)
        w2_ref,                         # (NLAYERS, 4D, D)
        vecs_ref,                       # (NLAYERS, 8, 4D)  packed small vectors
        lnfg_ref, lnfb_ref, proj_ref,   # (1,D), (1,D), (D,EMB)
        o_ref,                          # (B, EMB)
        x_scr):                         # VMEM (BL,D) scratch for the EOT gather
    # prompts + positional embedding (pos-emb pre-tiled to (B*L, D))
    x = x0_ref[...] + pe_ref[...]                              # (BL, D)
    amask = mask_ref[...]                                      # (BL, BL)

    # Per-head column selectors (1, D); built once, reused across layers.
    col = jax.lax.broadcasted_iota(jnp.int32, (1, D), 1)
    head_masks = [((col >= h * HD) & (col < (h + 1) * HD)).astype(jnp.float32)
                  for h in range(H)]

    for l in range(NLAYERS):                                   # static unroll
        vec = vecs_ref[l]                                      # (8, 4D)
        ln1g, ln1b = vec[0:1, 0:D], vec[1:2, 0:D]
        bqkv       = vec[2:3, 0:3 * D]
        bo         = vec[3:4, 0:D]
        ln2g, ln2b = vec[4:5, 0:D], vec[5:6, 0:D]
        b1         = vec[6:7, :]
        b2         = vec[7:8, 0:D]

        # --------------- causal multi-head self-attention (pre-LN) ----------
        xn = _layernorm(x, ln1g, ln1b)
        # Fused QKV projection: one lane-dense (BL,D)@(D,3D) matmul.
        qkv = jnp.dot(xn, wqkv_ref[l],
                      preferred_element_type=jnp.float32) + bqkv        # (BL,3D)
        q = qkv[:, 0:D]
        k = qkv[:, D:2 * D]
        v = qkv[:, 2 * D:3 * D]

        # Per-head scores / AV via column masks (no per-head weights, no lane
        # concat); the head outputs land directly in their lane block so the
        # output projection is one matmul.
        attn = jnp.zeros((BL, D), jnp.float32)
        for h in range(H):                                     # H=4 static unroll
            hm = head_masks[h]                                 # (1, D)
            s = jnp.einsum('ld,md->lm', q * hm, k,
                           preferred_element_type=jnp.float32) + amask  # (BL,BL)
            mx = jnp.max(s, axis=-1, keepdims=True)
            p = jnp.exp(s - mx)
            p = p * pl.reciprocal(jnp.sum(p, axis=-1, keepdims=True), approx=True)
            attn = attn + jnp.dot(p, v, preferred_element_type=jnp.float32) * hm
        # Single output projection (BL,D)@(D,D).
        x = x + jnp.dot(attn, wo_ref[l],
                        preferred_element_type=jnp.float32) + bo

        # ------------------------------ MLP (QuickGELU) ----------------------
        xn2 = _layernorm(x, ln2g, ln2b)
        h1 = jnp.dot(xn2, w1_ref[l], preferred_element_type=jnp.float32) + b1
        h1 = h1 * jax.nn.sigmoid(1.702 * h1)
        x = x + jnp.dot(h1, w2_ref[l], preferred_element_type=jnp.float32) + b2

    # -------------------- EOT gather + final LN + projection -----------------
    x_scr[...] = x
    rows = [x_scr[pl.ds(idx_ref[b] + b * L, 1), :] for b in range(B)]  # (1,D) each
    eot = jnp.concatenate(rows, axis=0)                        # (B, D)
    eot = _layernorm(eot, lnfg_ref[...], lnfb_ref[...])
    o_ref[...] = jnp.dot(eot, proj_ref[...], preferred_element_type=jnp.float32)


# ------------------------------------------------------- parameter repacking
def _prepare_params(params):
    """Layer-stack weights, fuse QKV (scale folded into Q), pack small vectors."""
    scale = 1.0 / (HD ** 0.5)
    wqkv_l, wo_l, w1_l, w2_l, vecs_l = [], [], [], [], []

    def pad_row(v):                       # (1, w) -> (1, 4D), zero padded
        return jnp.pad(v, ((0, 0), (0, 4 * D - v.shape[1])))

    for (ln1g, ln1b, wqkv, bqkv, wo, bo, ln2g, ln2b, w1, b1, w2, b2) in params["layers"]:
        # fold 1/sqrt(HD) into the Q columns of the fused QKV weight/bias
        wqkv_s = jnp.concatenate([wqkv[:, :D] * scale, wqkv[:, D:]], axis=1)  # (D, 3D)
        bqkv_s = jnp.concatenate([bqkv[:, :D] * scale, bqkv[:, D:]], axis=1)  # (1, 3D)
        wqkv_l.append(wqkv_s)
        wo_l.append(wo)
        w1_l.append(w1)
        w2_l.append(w2)
        vecs_l.append(jnp.concatenate(
            [pad_row(ln1g), pad_row(ln1b), pad_row(bqkv_s), pad_row(bo),
             pad_row(ln2g), pad_row(ln2b), pad_row(b1), pad_row(b2)], axis=0))  # (8,4D)

    return {
        "wqkv": jnp.stack(wqkv_l, axis=0),   # (NLAYERS, D, 3D)
        "wo":   jnp.stack(wo_l,   axis=0),   # (NLAYERS, D, D)
        "w1":   jnp.stack(w1_l,   axis=0),   # (NLAYERS, D, 4D)
        "w2":   jnp.stack(w2_l,   axis=0),   # (NLAYERS, 4D, D)
        "vecs": jnp.stack(vecs_l, axis=0),   # (NLAYERS, 8, 4D)
    }


def _build_attn_mask():
    """(B*L, B*L) block-diagonal causal mask (batch folded into rows)."""
    r = jnp.arange(BL)
    same_batch = (r[:, None] // L) == (r[None, :] // L)
    causal = (r[:, None] % L) >= (r[None, :] % L)
    return jnp.where(same_batch & causal, 0.0, NEG_INF).astype(jnp.float32)


# ---------------------------------------------------------------- forward --
def text_encoder_forward(prompts, tokenized_prompts, params):
    sp = _prepare_params(params)
    x0 = prompts.reshape(BL, D)                              # fold batch into rows
    pe = jnp.tile(params["pos_emb"], (B, 1))                 # (B*L, D)
    mask = _build_attn_mask()                                # (B*L, B*L)
    # argmax over token ids (EOT position) — cheap scalar glue, done in JAX
    eot_idx = jnp.argmax(tokenized_prompts, axis=-1).astype(jnp.int32)   # (B,)

    smem = pl.BlockSpec(memory_space=pltpu.MemorySpace.SMEM)
    vmem = lambda: pl.BlockSpec(memory_space=pltpu.MemorySpace.VMEM)

    return pl.pallas_call(
        fused_text_encoder_kernel,
        out_shape=jax.ShapeDtypeStruct((B, EMB), jnp.float32),
        in_specs=[smem] + [vmem() for _ in range(11)],
        out_specs=vmem(),
        scratch_shapes=[pltpu.VMEM((BL, D), jnp.float32)],   # resident activation
    )(eot_idx, x0, pe, mask,
      sp["wqkv"], sp["wo"], sp["w1"], sp["w2"], sp["vecs"],
      params["ln_final_g"], params["ln_final_b"], params["text_proj"])


# ------------------------------------------------------------ pure-JAX ref --
def reference_forward(prompts, tokenized_prompts, params):
    def ln(x, g, b):
        mu = x.mean(-1, keepdims=True)
        var = ((x - mu) ** 2).mean(-1, keepdims=True)
        return (x - mu) * jax.lax.rsqrt(var + EPS) * g + b

    x = prompts + params["pos_emb"][None]
    cmask = jnp.where(jnp.arange(L)[:, None] >= jnp.arange(L)[None, :], 0.0, NEG_INF)
    scale = 1.0 / (HD ** 0.5)
    for (ln1g, ln1b, wqkv, bqkv, wo, bo, ln2g, ln2b, w1, b1, w2, b2) in params["layers"]:
        xn = ln(x, ln1g, ln1b)
        qkv = xn @ wqkv + bqkv
        q, k, v = qkv[..., :D], qkv[..., D:2 * D], qkv[..., 2 * D:]
        q = q.reshape(B, L, H, HD).transpose(0, 2, 1, 3) * scale
        k = k.reshape(B, L, H, HD).transpose(0, 2, 1, 3)
        v = v.reshape(B, L, H, HD).transpose(0, 2, 1, 3)
        s = jnp.einsum('bhld,bhmd->bhlm', q, k) + cmask
        p = jax.nn.softmax(s, axis=-1)
        a = jnp.einsum('bhlm,bhmd->bhld', p, v).transpose(0, 2, 1, 3).reshape(B, L, D)
        x = x + a @ wo + bo
        xn2 = ln(x, ln2g, ln2b)
        h1 = xn2 @ w1 + b1
        h1 = h1 * jax.nn.sigmoid(1.702 * h1)
        x = x + h1 @ w2 + b2
    x = ln(x, params["ln_final_g"], params["ln_final_b"])
    idx = jnp.argmax(tokenized_prompts, axis=-1)
    return x[jnp.arange(B), idx] @ params["text_proj"]


# ----------------------------------------------------------------- params ---
def init_params(key):
    def nrm(k, shape):
        return 0.02 * jax.random.normal(k, shape, jnp.float32)
    n_per_layer = 4
    keys = jax.random.split(key, 2 + NLAYERS * n_per_layer)
    params = {
        "pos_emb": nrm(keys[0], (L, D)),
        "text_proj": nrm(keys[1], (D, EMB)),
        "ln_final_g": jnp.ones((1, D), jnp.float32),
        "ln_final_b": jnp.zeros((1, D), jnp.float32),
        "layers": [],
    }
    for i in range(NLAYERS):
        kk = keys[2 + i * n_per_layer: 2 + (i + 1) * n_per_layer]
        layer = (
            jnp.ones((1, D), jnp.float32), jnp.zeros((1, D), jnp.float32),   # ln_1 g,b
            nrm(kk[0], (D, 3 * D)), jnp.zeros((1, 3 * D), jnp.float32),      # W_qkv, b_qkv ("in,out")
            nrm(kk[1], (D, D)), jnp.zeros((1, D), jnp.float32),              # W_out, b_out
            jnp.ones((1, D), jnp.float32), jnp.zeros((1, D), jnp.float32),   # ln_2 g,b
            nrm(kk[2], (D, 4 * D)), jnp.zeros((1, 4 * D), jnp.float32),      # c_fc
            nrm(kk[3], (4 * D, D)), jnp.zeros((1, D), jnp.float32),          # c_proj
        )
        params["layers"].append(layer)
    return params


if __name__ == "__main__":
    key = jax.random.PRNGKey(0)
    kp, kx, kt = jax.random.split(key, 3)
    params = init_params(kp)

    prompts = 0.02 * jax.random.normal(kx, (B, L, D), jnp.float32)
    # synthetic tokenized prompts: EOT (largest id) at a known position per row
    tokenized = jax.random.randint(kt, (B, L), 1, 100).astype(jnp.int32)
    eot_pos = jnp.array([L - 1, L // 2], dtype=jnp.int32)
    tokenized = tokenized.at[jnp.arange(B), eot_pos].set(49407)

    out = jax.jit(text_encoder_forward)(prompts, tokenized, params)
    jax.block_until_ready(out)
    assert out.shape == (B, EMB) and out.dtype == jnp.float32

    ref = reference_forward(prompts, tokenized, params)
    err = float(jnp.max(jnp.abs(out - ref)))
    assert err < 5e-3, f"mismatch vs reference: max abs err = {err}"
    print("KERNEL_OK")
</pallas_src>

<mosaic_0001>
module attributes {stable_mosaic.version = 11 : i64} {
  func.func @fused_text_encoder_kernel(%arg0: memref<2xi32, #tpu.memory_space<smem>>, %arg1: memref<16x32xf32, #tpu.memory_space<vmem>>, %arg2: memref<16x32xf32, #tpu.memory_space<vmem>>, %arg3: memref<16x16xf32, #tpu.memory_space<vmem>>, %arg4: memref<2x32x96xf32, #tpu.memory_space<vmem>>, %arg5: memref<2x32x32xf32, #tpu.memory_space<vmem>>, %arg6: memref<2x32x128xf32, #tpu.memory_space<vmem>>, %arg7: memref<2x128x32xf32, #tpu.memory_space<vmem>>, %arg8: memref<2x8x128xf32, #tpu.memory_space<vmem>>, %arg9: memref<1x32xf32, #tpu.memory_space<vmem>>, %arg10: memref<1x32xf32, #tpu.memory_space<vmem>>, %arg11: memref<32x32xf32, #tpu.memory_space<vmem>>, %arg12: memref<2x32xf32, #tpu.memory_space<vmem>>, %arg13: memref<16x32xf32, #tpu.memory_space<vmem>>) attributes {dimension_semantics = [], scalar_prefetch = 0 : i64, scratch_operands = 1 : i64, tpu.core_type = #tpu.core_type<tc>} {
    %c0 = arith.constant 0 : index
    %c0_0 = arith.constant 0 : index
    %0 = vector.load %arg1[%c0, %c0_0] : memref<16x32xf32, #tpu.memory_space<vmem>>, vector<16x32xf32>
    %c0_1 = arith.constant 0 : index
    %c0_2 = arith.constant 0 : index
    %1 = vector.load %arg2[%c0_1, %c0_2] : memref<16x32xf32, #tpu.memory_space<vmem>>, vector<16x32xf32>
    %2 = arith.addf %0, %1 : vector<16x32xf32>
    %c0_3 = arith.constant 0 : index
    %c0_4 = arith.constant 0 : index
    %3 = vector.load %arg3[%c0_3, %c0_4] : memref<16x16xf32, #tpu.memory_space<vmem>>, vector<16x16xf32>
    %4 = tpu.iota {dimensions = array<i32: 1>} : vector<1x32xi32>
    %c0_i32 = arith.constant 0 : i32
    %5 = vector.broadcast %c0_i32 : i32 to vector<1x32xi32>
    %6 = arith.cmpi sge, %4, %5 : vector<1x32xi32>
    %c8_i32 = arith.constant 8 : i32
    %7 = vector.broadcast %c8_i32 : i32 to vector<1x32xi32>
    %8 = arith.cmpi slt, %4, %7 : vector<1x32xi32>
    %9 = arith.andi %6, %8 : vector<1x32xi1>
    %10 = arith.extui %9 : vector<1x32xi1> to vector<1x32xi32>
    %11 = arith.sitofp %10 : vector<1x32xi32> to vector<1x32xf32>
    %c8_i32_5 = arith.constant 8 : i32
    %12 = vector.broadcast %c8_i32_5 : i32 to vector<1x32xi32>
    %13 = arith.cmpi sge, %4, %12 : vector<1x32xi32>
    %c16_i32 = arith.constant 16 : i32
    %14 = vector.broadcast %c16_i32 : i32 to vector<1x32xi32>
    %15 = arith.cmpi slt, %4, %14 : vector<1x32xi32>
    %16 = arith.andi %13, %15 : vector<1x32xi1>
    %17 = arith.extui %16 : vector<1x32xi1> to vector<1x32xi32>
    %18 = arith.sitofp %17 : vector<1x32xi32> to vector<1x32xf32>
    %c16_i32_6 = arith.constant 16 : i32
    %19 = vector.broadcast %c16_i32_6 : i32 to vector<1x32xi32>
    %20 = arith.cmpi sge, %4, %19 : vector<1x32xi32>
    %c24_i32 = arith.constant 24 : i32
    %21 = vector.broadcast %c24_i32 : i32 to vector<1x32xi32>
    %22 = arith.cmpi slt, %4, %21 : vector<1x32xi32>
    %23 = arith.andi %20, %22 : vector<1x32xi1>
    %24 = arith.extui %23 : vector<1x32xi1> to vector<1x32xi32>
    %25 = arith.sitofp %24 : vector<1x32xi32> to vector<1x32xf32>
    %c24_i32_7 = arith.constant 24 : i32
    %26 = vector.broadcast %c24_i32_7 : i32 to vector<1x32xi32>
    %27 = arith.cmpi sge, %4, %26 : vector<1x32xi32>
    %c32_i32 = arith.constant 32 : i32
    %28 = vector.broadcast %c32_i32 : i32 to vector<1x32xi32>
    %29 = arith.cmpi slt, %4, %28 : vector<1x32xi32>
    %30 = arith.andi %27, %29 : vector<1x32xi1>
    %31 = arith.extui %30 : vector<1x32xi1> to vector<1x32xi32>
    %32 = arith.sitofp %31 : vector<1x32xi32> to vector<1x32xf32>
    %c0_8 = arith.constant 0 : index
    %c0_9 = arith.constant 0 : index
    %c0_10 = arith.constant 0 : index
    %33 = vector.load %arg8[%c0_8, %c0_9, %c0_10] : memref<2x8x128xf32, #tpu.memory_space<vmem>>, vector<1x8x128xf32>
    %34 = vector.shape_cast %33 : vector<1x8x128xf32> to vector<8x128xf32>
    %35 = vector.extract_strided_slice %34 {offsets = [0, 0], sizes = [1, 32], strides = [1, 1]} : vector<8x128xf32> to vector<1x32xf32>
    %36 = vector.extract_strided_slice %34 {offsets = [1, 0], sizes = [1, 32], strides = [1, 1]} : vector<8x128xf32> to vector<1x32xf32>
    %37 = vector.extract_strided_slice %34 {offsets = [2, 0], sizes = [1, 96], strides = [1, 1]} : vector<8x128xf32> to vector<1x96xf32>
    %38 = vector.extract_strided_slice %34 {offsets = [3, 0], sizes = [1, 32], strides = [1, 1]} : vector<8x128xf32> to vector<1x32xf32>
    %39 = vector.extract_strided_slice %34 {offsets = [4, 0], sizes = [1, 32], strides = [1, 1]} : vector<8x128xf32> to vector<1x32xf32>
    %40 = vector.extract_strided_slice %34 {offsets = [5, 0], sizes = [1, 32], strides = [1, 1]} : vector<8x128xf32> to vector<1x32xf32>
    %41 = vector.extract_strided_slice %34 {offsets = [6, 0], sizes = [1, 128], strides = [1, 1]} : vector<8x128xf32> to vector<1x128xf32>
    %42 = vector.extract_strided_slice %34 {offsets = [7, 0], sizes = [1, 32], strides = [1, 1]} : vector<8x128xf32> to vector<1x32xf32>
    %cst = arith.constant dense<0.000000e+00> : vector<16xf32>
    %43 = vector.multi_reduction <add>, %2, %cst [1] : vector<16x32xf32> to vector<16xf32>
    %44 = vector.shape_cast %43 : vector<16xf32> to vector<16x1xf32>
    %cst_11 = arith.constant 3.125000e-02 : f32
    %45 = vector.broadcast %cst_11 : f32 to vector<16x1xf32>
    %46 = arith.mulf %44, %45 : vector<16x1xf32>
    %47 = arith.mulf %2, %2 : vector<16x32xf32>
    %cst_12 = arith.constant dense<0.000000e+00> : vector<16xf32>
    %48 = vector.multi_reduction <add>, %47, %cst_12 [1] : vector<16x32xf32> to vector<16xf32>
    %49 = vector.shape_cast %48 : vector<16xf32> to vector<16x1xf32>
    %cst_13 = arith.constant 3.125000e-02 : f32
    %50 = vector.broadcast %cst_13 : f32 to vector<16x1xf32>
    %51 = arith.mulf %49, %50 : vector<16x1xf32>
    %52 = arith.mulf %46, %46 : vector<16x1xf32>
    %53 = arith.subf %51, %52 : vector<16x1xf32>
    %54 = vector.broadcast %46 : vector<16x1xf32> to vector<16x32xf32>
    %55 = arith.subf %2, %54 : vector<16x32xf32>
    %cst_14 = arith.constant 9.99999974E-6 : f32
    %56 = vector.broadcast %cst_14 : f32 to vector<16x1xf32>
    %57 = arith.addf %53, %56 : vector<16x1xf32>
    %58 = math.rsqrt %57 : vector<16x1xf32>
    %59 = vector.broadcast %58 : vector<16x1xf32> to vector<16x32xf32>
    %60 = arith.mulf %55, %59 : vector<16x32xf32>
    %61 = vector.broadcast %35 : vector<1x32xf32> to vector<16x32xf32>
    %62 = arith.mulf %60, %61 : vector<16x32xf32>
    %63 = vector.broadcast %36 : vector<1x32xf32> to vector<16x32xf32>
    %64 = arith.addf %62, %63 : vector<16x32xf32>
    %c0_15 = arith.constant 0 : index
    %c0_16 = arith.constant 0 : index
    %c0_17 = arith.constant 0 : index
    %65 = vector.load %arg4[%c0_15, %c0_16, %c0_17] : memref<2x32x96xf32, #tpu.memory_space<vmem>>, vector<1x32x96xf32>
    %66 = vector.shape_cast %65 : vector<1x32x96xf32> to vector<32x96xf32>
    %cst_18 = arith.constant dense<0.000000e+00> : vector<16x96xf32>
    %67 = tpu.matmul %64, %66, %cst_18 {dimension_numbers = #tpu.dot_dimension_numbers<[1], [0], [0], [1], [0, 0, 1, 1], [], []>} : vector<16x32xf32>, vector<32x96xf32>, vector<16x96xf32> -> vector<16x96xf32>
    %68 = vector.broadcast %37 : vector<1x96xf32> to vector<16x96xf32>
    %69 = arith.addf %67, %68 : vector<16x96xf32>
    %70 = vector.extract_strided_slice %69 {offsets = [0, 0], sizes = [16, 32], strides = [1, 1]} : vector<16x96xf32> to vector<16x32xf32>
    %71 = vector.extract_strided_slice %69 {offsets = [0, 32], sizes = [16, 32], strides = [1, 1]} : vector<16x96xf32> to vector<16x32xf32>
    %72 = vector.extract_strided_slice %69 {offsets = [0, 64], sizes = [16, 32], strides = [1, 1]} : vector<16x96xf32> to vector<16x32xf32>
    %cst_19 = arith.constant 0.000000e+00 : f32
    %73 = vector.broadcast %cst_19 : f32 to vector<16x32xf32>
    %74 = vector.broadcast %11 : vector<1x32xf32> to vector<16x32xf32>
    %75 = arith.mulf %70, %74 : vector<16x32xf32>
    "tpu.trace_start"() <{level = 10 : i32, message = "ld,md->lm"}> : () -> ()
    %cst_20 = arith.constant dense<0.000000e+00> : vector<16x16xf32>
    %76 = tpu.matmul %75, %71, %cst_20 {dimension_numbers = #tpu.dot_dimension_numbers<[1], [1], [0], [0], [0, 0, 1, 0], [], []>} : vector<16x32xf32>, vector<16x32xf32>, vector<16x16xf32> -> vector<16x16xf32>
    "tpu.trace_stop"() : () -> ()
    %77 = arith.addf %76, %3 : vector<16x16xf32>
    %cst_21 = arith.constant dense<0xFF800000> : vector<16xf32>
    %78 = vector.multi_reduction <maximumf>, %77, %cst_21 [1] : vector<16x16xf32> to vector<16xf32>
    %79 = vector.shape_cast %78 : vector<16xf32> to vector<16x1xf32>
    %80 = vector.broadcast %79 : vector<16x1xf32> to vector<16x16xf32>
    %81 = arith.subf %77, %80 : vector<16x16xf32>
    %82 = math.exp %81 : vector<16x16xf32>
    %cst_22 = arith.constant dense<0.000000e+00> : vector<16xf32>
    %83 = vector.multi_reduction <add>, %82, %cst_22 [1] : vector<16x16xf32> to vector<16xf32>
    %84 = vector.shape_cast %83 : vector<16xf32> to vector<16x1xf32>
    %85 = tpu.reciprocal %84 {approx = true} : vector<16x1xf32> -> vector<16x1xf32>
    %86 = vector.broadcast %85 : vector<16x1xf32> to vector<16x16xf32>
    %87 = arith.mulf %82, %86 : vector<16x16xf32>
    %cst_23 = arith.constant dense<0.000000e+00> : vector<16x32xf32>
    %88 = tpu.matmul %87, %72, %cst_23 {dimension_numbers = #tpu.dot_dimension_numbers<[1], [0], [0], [1], [0, 0, 1, 1], [], []>} : vector<16x16xf32>, vector<16x32xf32>, vector<16x32xf32> -> vector<16x32xf32>
    %89 = vector.broadcast %11 : vector<1x32xf32> to vector<16x32xf32>
    %90 = arith.mulf %88, %89 : vector<16x32xf32>
    %91 = arith.addf %73, %90 : vector<16x32xf32>
    %92 = vector.broadcast %18 : vector<1x32xf32> to vector<16x32xf32>
    %93 = arith.mulf %70, %92 : vector<16x32xf32>
    "tpu.trace_start"() <{level = 10 : i32, message = "ld,md->lm"}> : () -> ()
    %cst_24 = arith.constant dense<0.000000e+00> : vector<16x16xf32>
    %94 = tpu.matmul %93, %71, %cst_24 {dimension_numbers = #tpu.dot_dimension_numbers<[1], [1], [0], [0], [0, 0, 1, 0], [], []>} : vector<16x32xf32>, vector<16x32xf32>, vector<16x16xf32> -> vector<16x16xf32>
    "tpu.trace_stop"() : () -> ()
    %95 = arith.addf %94, %3 : vector<16x16xf32>
    %cst_25 = arith.constant dense<0xFF800000> : vector<16xf32>
    %96 = vector.multi_reduction <maximumf>, %95, %cst_25 [1] : vector<16x16xf32> to vector<16xf32>
    %97 = vector.shape_cast %96 : vector<16xf32> to vector<16x1xf32>
    %98 = vector.broadcast %97 : vector<16x1xf32> to vector<16x16xf32>
    %99 = arith.subf %95, %98 : vector<16x16xf32>
    %100 = math.exp %99 : vector<16x16xf32>
    %cst_26 = arith.constant dense<0.000000e+00> : vector<16xf32>
    %101 = vector.multi_reduction <add>, %100, %cst_26 [1] : vector<16x16xf32> to vector<16xf32>
    %102 = vector.shape_cast %101 : vector<16xf32> to vector<16x1xf32>
    %103 = tpu.reciprocal %102 {approx = true} : vector<16x1xf32> -> vector<16x1xf32>
    %104 = vector.broadcast %103 : vector<16x1xf32> to vector<16x16xf32>
    %105 = arith.mulf %100, %104 : vector<16x16xf32>
    %cst_27 = arith.constant dense<0.000000e+00> : vector<16x32xf32>
    %106 = tpu.matmul %105, %72, %cst_27 {dimension_numbers = #tpu.dot_dimension_numbers<[1], [0], [0], [1], [0, 0, 1, 1], [], []>} : vector<16x16xf32>, vector<16x32xf32>, vector<16x32xf32> -> vector<16x32xf32>
    %107 = vector.broadcast %18 : vector<1x32xf32> to vector<16x32xf32>
    %108 = arith.mulf %106, %107 : vector<16x32xf32>
    %109 = arith.addf %91, %108 : vector<16x32xf32>
    %110 = vector.broadcast %25 : vector<1x32xf32> to vector<16x32xf32>
    %111 = arith.mulf %70, %110 : vector<16x32xf32>
    "tpu.trace_start"() <{level = 10 : i32, message = "ld,md->lm"}> : () -> ()
    %cst_28 = arith.constant dense<0.000000e+00> : vector<16x16xf32>
    %112 = tpu.matmul %111, %71, %cst_28 {dimension_numbers = #tpu.dot_dimension_numbers<[1], [1], [0], [0], [0, 0, 1, 0], [], []>} : vector<16x32xf32>, vector<16x32xf32>, vector<16x16xf32> -> vector<16x16xf32>
    "tpu.trace_stop"() : () -> ()
    %113 = arith.addf %112, %3 : vector<16x16xf32>
    %cst_29 = arith.constant dense<0xFF800000> : vector<16xf32>
    %114 = vector.multi_reduction <maximumf>, %113, %cst_29 [1] : vector<16x16xf32> to vector<16xf32>
    %115 = vector.shape_cast %114 : vector<16xf32> to vector<16x1xf32>
    %116 = vector.broadcast %115 : vector<16x1xf32> to vector<16x16xf32>
    %117 = arith.subf %113, %116 : vector<16x16xf32>
    %118 = math.exp %117 : vector<16x16xf32>
    %cst_30 = arith.constant dense<0.000000e+00> : vector<16xf32>
    %119 = vector.multi_reduction <add>, %118, %cst_30 [1] : vector<16x16xf32> to vector<16xf32>
    %120 = vector.shape_cast %119 : vector<16xf32> to vector<16x1xf32>
    %121 = tpu.reciprocal %120 {approx = true} : vector<16x1xf32> -> vector<16x1xf32>
    %122 = vector.broadcast %121 : vector<16x1xf32> to vector<16x16xf32>
    %123 = arith.mulf %118, %122 : vector<16x16xf32>
    %cst_31 = arith.constant dense<0.000000e+00> : vector<16x32xf32>
    %124 = tpu.matmul %123, %72, %cst_31 {dimension_numbers = #tpu.dot_dimension_numbers<[1], [0], [0], [1], [0, 0, 1, 1], [], []>} : vector<16x16xf32>, vector<16x32xf32>, vector<16x32xf32> -> vector<16x32xf32>
    %125 = vector.broadcast %25 : vector<1x32xf32> to vector<16x32xf32>
    %126 = arith.mulf %124, %125 : vector<16x32xf32>
    %127 = arith.addf %109, %126 : vector<16x32xf32>
    %128 = vector.broadcast %32 : vector<1x32xf32> to vector<16x32xf32>
    %129 = arith.mulf %70, %128 : vector<16x32xf32>
    "tpu.trace_start"() <{level = 10 : i32, message = "ld,md->lm"}> : () -> ()
    %cst_32 = arith.constant dense<0.000000e+00> : vector<16x16xf32>
    %130 = tpu.matmul %129, %71, %cst_32 {dimension_numbers = #tpu.dot_dimension_numbers<[1], [1], [0], [0], [0, 0, 1, 0], [], []>} : vector<16x32xf32>, vector<16x32xf32>, vector<16x16xf32> -> vector<16x16xf32>
    "tpu.trace_stop"() : () -> ()
    %131 = arith.addf %130, %3 : vector<16x16xf32>
    %cst_33 = arith.constant dense<0xFF800000> : vector<16xf32>
    %132 = vector.multi_reduction <maximumf>, %131, %cst_33 [1] : vector<16x16xf32> to vector<16xf32>
    %133 = vector.shape_cast %132 : vector<16xf32> to vector<16x1xf32>
    %134 = vector.broadcast %133 : vector<16x1xf32> to vector<16x16xf32>
    %135 = arith.subf %131, %134 : vector<16x16xf32>
    %136 = math.exp %135 : vector<16x16xf32>
    %cst_34 = arith.constant dense<0.000000e+00> : vector<16xf32>
    %137 = vector.multi_reduction <add>, %136, %cst_34 [1] : vector<16x16xf32> to vector<16xf32>
    %138 = vector.shape_cast %137 : vector<16xf32> to vector<16x1xf32>
    %139 = tpu.reciprocal %138 {approx = true} : vector<16x1xf32> -> vector<16x1xf32>
    %140 = vector.broadcast %139 : vector<16x1xf32> to vector<16x16xf32>
    %141 = arith.mulf %136, %140 : vector<16x16xf32>
    %cst_35 = arith.constant dense<0.000000e+00> : vector<16x32xf32>
    %142 = tpu.matmul %141, %72, %cst_35 {dimension_numbers = #tpu.dot_dimension_numbers<[1], [0], [0], [1], [0, 0, 1, 1], [], []>} : vector<16x16xf32>, vector<16x32xf32>, vector<16x32xf32> -> vector<16x32xf32>
    %143 = vector.broadcast %32 : vector<1x32xf32> to vector<16x32xf32>
    %144 = arith.mulf %142, %143 : vector<16x32xf32>
    %145 = arith.addf %127, %144 : vector<16x32xf32>
    %c0_36 = arith.constant 0 : index
    %c0_37 = arith.constant 0 : index
    %c0_38 = arith.constant 0 : index
    %146 = vector.load %arg5[%c0_36, %c0_37, %c0_38] : memref<2x32x32xf32, #tpu.memory_space<vmem>>, vector<1x32x32xf32>
    %147 = vector.shape_cast %146 : vector<1x32x32xf32> to vector<32x32xf32>
    %cst_39 = arith.constant dense<0.000000e+00> : vector<16x32xf32>
    %148 = tpu.matmul %145, %147, %cst_39 {dimension_numbers = #tpu.dot_dimension_numbers<[1], [0], [0], [1], [0, 0, 1, 1], [], []>} : vector<16x32xf32>, vector<32x32xf32>, vector<16x32xf32> -> vector<16x32xf32>
    %149 = arith.addf %2, %148 : vector<16x32xf32>
    %150 = vector.broadcast %38 : vector<1x32xf32> to vector<16x32xf32>
    %151 = arith.addf %149, %150 : vector<16x32xf32>
    %cst_40 = arith.constant dense<0.000000e+00> : vector<16xf32>
    %152 = vector.multi_reduction <add>, %151, %cst_40 [1] : vector<16x32xf32> to vector<16xf32>
    %153 = vector.shape_cast %152 : vector<16xf32> to vector<16x1xf32>
    %cst_41 = arith.constant 3.125000e-02 : f32
    %154 = vector.broadcast %cst_41 : f32 to vector<16x1xf32>
    %155 = arith.mulf %153, %154 : vector<16x1xf32>
    %156 = arith.mulf %151, %151 : vector<16x32xf32>
    %cst_42 = arith.constant dense<0.000000e+00> : vector<16xf32>
    %157 = vector.multi_reduction <add>, %156, %cst_42 [1] : vector<16x32xf32> to vector<16xf32>
    %158 = vector.shape_cast %157 : vector<16xf32> to vector<16x1xf32>
    %cst_43 = arith.constant 3.125000e-02 : f32
    %159 = vector.broadcast %cst_43 : f32 to vector<16x1xf32>
    %160 = arith.mulf %158, %159 : vector<16x1xf32>
    %161 = arith.mulf %155, %155 : vector<16x1xf32>
    %162 = arith.subf %160, %161 : vector<16x1xf32>
    %163 = vector.broadcast %155 : vector<16x1xf32> to vector<16x32xf32>
    %164 = arith.subf %151, %163 : vector<16x32xf32>
    %cst_44 = arith.constant 9.99999974E-6 : f32
    %165 = vector.broadcast %cst_44 : f32 to vector<16x1xf32>
    %166 = arith.addf %162, %165 : vector<16x1xf32>
    %167 = math.rsqrt %166 : vector<16x1xf32>
    %168 = vector.broadcast %167 : vector<16x1xf32> to vector<16x32xf32>
    %169 = arith.mulf %164, %168 : vector<16x32xf32>
    %170 = vector.broadcast %39 : vector<1x32xf32> to vector<16x32xf32>
    %171 = arith.mulf %169, %170 : vector<16x32xf32>
    %172 = vector.broadcast %40 : vector<1x32xf32> to vector<16x32xf32>
    %173 = arith.addf %171, %172 : vector<16x32xf32>
    %c0_45 = arith.constant 0 : index
    %c0_46 = arith.constant 0 : index
    %c0_47 = arith.constant 0 : index
    %174 = vector.load %arg6[%c0_45, %c0_46, %c0_47] : memref<2x32x128xf32, #tpu.memory_space<vmem>>, vector<1x32x128xf32>
    %175 = vector.shape_cast %174 : vector<1x32x128xf32> to vector<32x128xf32>
    %cst_48 = arith.constant dense<0.000000e+00> : vector<16x128xf32>
    %176 = tpu.matmul %173, %175, %cst_48 {dimension_numbers = #tpu.dot_dimension_numbers<[1], [0], [0], [1], [0, 0, 1, 1], [], []>} : vector<16x32xf32>, vector<32x128xf32>, vector<16x128xf32> -> vector<16x128xf32>
    %177 = vector.broadcast %41 : vector<1x128xf32> to vector<16x128xf32>
    %178 = arith.addf %176, %177 : vector<16x128xf32>
    %cst_49 = arith.constant 1.702000e+00 : f32
    %179 = vector.broadcast %cst_49 : f32 to vector<16x128xf32>
    %180 = arith.mulf %179, %178 : vector<16x128xf32>
    %181 = arith.negf %180 : vector<16x128xf32>
    %182 = math.exp %181 : vector<16x128xf32>
    %cst_50 = arith.constant 1.000000e+00 : f32
    %183 = vector.broadcast %cst_50 : f32 to vector<16x128xf32>
    %184 = arith.addf %183, %182 : vector<16x128xf32>
    %185 = arith.divf %183, %184 : vector<16x128xf32>
    %186 = arith.mulf %178, %185 : vector<16x128xf32>
    %c0_51 = arith.constant 0 : index
    %c0_52 = arith.constant 0 : index
    %c0_53 = arith.constant 0 : index
    %187 = vector.load %arg7[%c0_51, %c0_52, %c0_53] : memref<2x128x32xf32, #tpu.memory_space<vmem>>, vector<1x128x32xf32>
    %188 = vector.shape_cast %187 : vector<1x128x32xf32> to vector<128x32xf32>
    %cst_54 = arith.constant dense<0.000000e+00> : vector<16x32xf32>
    %189 = tpu.matmul %186, %188, %cst_54 {dimension_numbers = #tpu.dot_dimension_numbers<[1], [0], [0], [1], [0, 0, 1, 1], [], []>} : vector<16x128xf32>, vector<128x32xf32>, vector<16x32xf32> -> vector<16x32xf32>
    %190 = arith.addf %151, %189 : vector<16x32xf32>
    %191 = vector.broadcast %42 : vector<1x32xf32> to vector<16x32xf32>
    %192 = arith.addf %190, %191 : vector<16x32xf32>
    %c1 = arith.constant 1 : index
    %c0_55 = arith.constant 0 : index
    %c0_56 = arith.constant 0 : index
    %193 = vector.load %arg8[%c1, %c0_55, %c0_56] : memref<2x8x128xf32, #tpu.memory_space<vmem>>, vector<1x8x128xf32>
    %194 = vector.shape_cast %193 : vector<1x8x128xf32> to vector<8x128xf32>
    %195 = vector.extract_strided_slice %194 {offsets = [0, 0], sizes = [1, 32], strides = [1, 1]} : vector<8x128xf32> to vector<1x32xf32>
    %196 = vector.extract_strided_slice %194 {offsets = [1, 0], sizes = [1, 32], strides = [1, 1]} : vector<8x128xf32> to vector<1x32xf32>
    %197 = vector.extract_strided_slice %194 {offsets = [2, 0], sizes = [1, 96], strides = [1, 1]} : vector<8x128xf32> to vector<1x96xf32>
    %198 = vector.extract_strided_slice %194 {offsets = [3, 0], sizes = [1, 32], strides = [1, 1]} : vector<8x128xf32> to vector<1x32xf32>
    %199 = vector.extract_strided_slice %194 {offsets = [4, 0], sizes = [1, 32], strides = [1, 1]} : vector<8x128xf32> to vector<1x32xf32>
    %200 = vector.extract_strided_slice %194 {offsets = [5, 0], sizes = [1, 32], strides = [1, 1]} : vector<8x128xf32> to vector<1x32xf32>
    %201 = vector.extract_strided_slice %194 {offsets = [6, 0], sizes = [1, 128], strides = [1, 1]} : vector<8x128xf32> to vector<1x128xf32>
    %202 = vector.extract_strided_slice %194 {offsets = [7, 0], sizes = [1, 32], strides = [1, 1]} : vector<8x128xf32> to vector<1x32xf32>
    %cst_57 = arith.constant dense<0.000000e+00> : vector<16xf32>
    %203 = vector.multi_reduction <add>, %192, %cst_57 [1] : vector<16x32xf32> to vector<16xf32>
    %204 = vector.shape_cast %203 : vector<16xf32> to vector<16x1xf32>
    %cst_58 = arith.constant 3.125000e-02 : f32
    %205 = vector.broadcast %cst_58 : f32 to vector<16x1xf32>
    %206 = arith.mulf %204, %205 : vector<16x1xf32>
    %207 = arith.mulf %192, %192 : vector<16x32xf32>
    %cst_59 = arith.constant dense<0.000000e+00> : vector<16xf32>
    %208 = vector.multi_reduction <add>, %207, %cst_59 [1] : vector<16x32xf32> to vector<16xf32>
    %209 = vector.shape_cast %208 : vector<16xf32> to vector<16x1xf32>
    %cst_60 = arith.constant 3.125000e-02 : f32
    %210 = vector.broadcast %cst_60 : f32 to vector<16x1xf32>
    %211 = arith.mulf %209, %210 : vector<16x1xf32>
    %212 = arith.mulf %206, %206 : vector<16x1xf32>
    %213 = arith.subf %211, %212 : vector<16x1xf32>
    %214 = vector.broadcast %206 : vector<16x1xf32> to vector<16x32xf32>
    %215 = arith.subf %192, %214 : vector<16x32xf32>
    %cst_61 = arith.constant 9.99999974E-6 : f32
    %216 = vector.broadcast %cst_61 : f32 to vector<16x1xf32>
    %217 = arith.addf %213, %216 : vector<16x1xf32>
    %218 = math.rsqrt %217 : vector<16x1xf32>
    %219 = vector.broadcast %218 : vector<16x1xf32> to vector<16x32xf32>
    %220 = arith.mulf %215, %219 : vector<16x32xf32>
    %221 = vector.broadcast %195 : vector<1x32xf32> to vector<16x32xf32>
    %222 = arith.mulf %220, %221 : vector<16x32xf32>
    %223 = vector.broadcast %196 : vector<1x32xf32> to vector<16x32xf32>
    %224 = arith.addf %222, %223 : vector<16x32xf32>
    %c1_62 = arith.constant 1 : index
    %c0_63 = arith.constant 0 : index
    %c0_64 = arith.constant 0 : index
    %225 = vector.load %arg4[%c1_62, %c0_63, %c0_64] : memref<2x32x96xf32, #tpu.memory_space<vmem>>, vector<1x32x96xf32>
    %226 = vector.shape_cast %225 : vector<1x32x96xf32> to vector<32x96xf32>
    %cst_65 = arith.constant dense<0.000000e+00> : vector<16x96xf32>
    %227 = tpu.matmul %224, %226, %cst_65 {dimension_numbers = #tpu.dot_dimension_numbers<[1], [0], [0], [1], [0, 0, 1, 1], [], []>} : vector<16x32xf32>, vector<32x96xf32>, vector<16x96xf32> -> vector<16x96xf32>
    %228 = vector.broadcast %197 : vector<1x96xf32> to vector<16x96xf32>
    %229 = arith.addf %227, %228 : vector<16x96xf32>
    %230 = vector.extract_strided_slice %229 {offsets = [0, 0], sizes = [16, 32], strides = [1, 1]} : vector<16x96xf32> to vector<16x32xf32>
    %231 = vector.extract_strided_slice %229 {offsets = [0, 32], sizes = [16, 32], strides = [1, 1]} : vector<16x96xf32> to vector<16x32xf32>
    %232 = vector.extract_strided_slice %229 {offsets = [0, 64], sizes = [16, 32], strides = [1, 1]} : vector<16x96xf32> to vector<16x32xf32>
    %cst_66 = arith.constant 0.000000e+00 : f32
    %233 = vector.broadcast %cst_66 : f32 to vector<16x32xf32>
    %234 = vector.broadcast %11 : vector<1x32xf32> to vector<16x32xf32>
    %235 = arith.mulf %230, %234 : vector<16x32xf32>
    "tpu.trace_start"() <{level = 10 : i32, message = "ld,md->lm"}> : () -> ()
    %cst_67 = arith.constant dense<0.000000e+00> : vector<16x16xf32>
    %236 = tpu.matmul %235, %231, %cst_67 {dimension_numbers = #tpu.dot_dimension_numbers<[1], [1], [0], [0], [0, 0, 1, 0], [], []>} : vector<16x32xf32>, vector<16x32xf32>, vector<16x16xf32> -> vector<16x16xf32>
    "tpu.trace_stop"() : () -> ()
    %237 = arith.addf %236, %3 : vector<16x16xf32>
    %cst_68 = arith.constant dense<0xFF800000> : vector<16xf32>
    %238 = vector.multi_reduction <maximumf>, %237, %cst_68 [1] : vector<16x16xf32> to vector<16xf32>
    %239 = vector.shape_cast %238 : vector<16xf32> to vector<16x1xf32>
    %240 = vector.broadcast %239 : vector<16x1xf32> to vector<16x16xf32>
    %241 = arith.subf %237, %240 : vector<16x16xf32>
    %242 = math.exp %241 : vector<16x16xf32>
    %cst_69 = arith.constant dense<0.000000e+00> : vector<16xf32>
    %243 = vector.multi_reduction <add>, %242, %cst_69 [1] : vector<16x16xf32> to vector<16xf32>
    %244 = vector.shape_cast %243 : vector<16xf32> to vector<16x1xf32>
    %245 = tpu.reciprocal %244 {approx = true} : vector<16x1xf32> -> vector<16x1xf32>
    %246 = vector.broadcast %245 : vector<16x1xf32> to vector<16x16xf32>
    %247 = arith.mulf %242, %246 : vector<16x16xf32>
    %cst_70 = arith.constant dense<0.000000e+00> : vector<16x32xf32>
    %248 = tpu.matmul %247, %232, %cst_70 {dimension_numbers = #tpu.dot_dimension_numbers<[1], [0], [0], [1], [0, 0, 1, 1], [], []>} : vector<16x16xf32>, vector<16x32xf32>, vector<16x32xf32> -> vector<16x32xf32>
    %249 = vector.broadcast %11 : vector<1x32xf32> to vector<16x32xf32>
    %250 = arith.mulf %248, %249 : vector<16x32xf32>
    %251 = arith.addf %233, %250 : vector<16x32xf32>
    %252 = vector.broadcast %18 : vector<1x32xf32> to vector<16x32xf32>
    %253 = arith.mulf %230, %252 : vector<16x32xf32>
    "tpu.trace_start"() <{level = 10 : i32, message = "ld,md->lm"}> : () -> ()
    %cst_71 = arith.constant dense<0.000000e+00> : vector<16x16xf32>
    %254 = tpu.matmul %253, %231, %cst_71 {dimension_numbers = #tpu.dot_dimension_numbers<[1], [1], [0], [0], [0, 0, 1, 0], [], []>} : vector<16x32xf32>, vector<16x32xf32>, vector<16x16xf32> -> vector<16x16xf32>
    "tpu.trace_stop"() : () -> ()
    %255 = arith.addf %254, %3 : vector<16x16xf32>
    %cst_72 = arith.constant dense<0xFF800000> : vector<16xf32>
    %256 = vector.multi_reduction <maximumf>, %255, %cst_72 [1] : vector<16x16xf32> to vector<16xf32>
    %257 = vector.shape_cast %256 : vector<16xf32> to vector<16x1xf32>
    %258 = vector.broadcast %257 : vector<16x1xf32> to vector<16x16xf32>
    %259 = arith.subf %255, %258 : vector<16x16xf32>
    %260 = math.exp %259 : vector<16x16xf32>
    %cst_73 = arith.constant dense<0.000000e+00> : vector<16xf32>
    %261 = vector.multi_reduction <add>, %260, %cst_73 [1] : vector<16x16xf32> to vector<16xf32>
    %262 = vector.shape_cast %261 : vector<16xf32> to vector<16x1xf32>
    %263 = tpu.reciprocal %262 {approx = true} : vector<16x1xf32> -> vector<16x1xf32>
    %264 = vector.broadcast %263 : vector<16x1xf32> to vector<16x16xf32>
    %265 = arith.mulf %260, %264 : vector<16x16xf32>
    %cst_74 = arith.constant dense<0.000000e+00> : vector<16x32xf32>
    %266 = tpu.matmul %265, %232, %cst_74 {dimension_numbers = #tpu.dot_dimension_numbers<[1], [0], [0], [1], [0, 0, 1, 1], [], []>} : vector<16x16xf32>, vector<16x32xf32>, vector<16x32xf32> -> vector<16x32xf32>
    %267 = vector.broadcast %18 : vector<1x32xf32> to vector<16x32xf32>
    %268 = arith.mulf %266, %267 : vector<16x32xf32>
    %269 = arith.addf %251, %268 : vector<16x32xf32>
    %270 = vector.broadcast %25 : vector<1x32xf32> to vector<16x32xf32>
    %271 = arith.mulf %230, %270 : vector<16x32xf32>
    "tpu.trace_start"() <{level = 10 : i32, message = "ld,md->lm"}> : () -> ()
    %cst_75 = arith.constant dense<0.000000e+00> : vector<16x16xf32>
    %272 = tpu.matmul %271, %231, %cst_75 {dimension_numbers = #tpu.dot_dimension_numbers<[1], [1], [0], [0], [0, 0, 1, 0], [], []>} : vector<16x32xf32>, vector<16x32xf32>, vector<16x16xf32> -> vector<16x16xf32>
    "tpu.trace_stop"() : () -> ()
    %273 = arith.addf %272, %3 : vector<16x16xf32>
    %cst_76 = arith.constant dense<0xFF800000> : vector<16xf32>
    %274 = vector.multi_reduction <maximumf>, %273, %cst_76 [1] : vector<16x16xf32> to vector<16xf32>
    %275 = vector.shape_cast %274 : vector<16xf32> to vector<16x1xf32>
    %276 = vector.broadcast %275 : vector<16x1xf32> to vector<16x16xf32>
    %277 = arith.subf %273, %276 : vector<16x16xf32>
    %278 = math.exp %277 : vector<16x16xf32>
    %cst_77 = arith.constant dense<0.000000e+00> : vector<16xf32>
    %279 = vector.multi_reduction <add>, %278, %cst_77 [1] : vector<16x16xf32> to vector<16xf32>
    %280 = vector.shape_cast %279 : vector<16xf32> to vector<16x1xf32>
    %281 = tpu.reciprocal %280 {approx = true} : vector<16x1xf32> -> vector<16x1xf32>
    %282 = vector.broadcast %281 : vector<16x1xf32> to vector<16x16xf32>
    %283 = arith.mulf %278, %282 : vector<16x16xf32>
    %cst_78 = arith.constant dense<0.000000e+00> : vector<16x32xf32>
    %284 = tpu.matmul %283, %232, %cst_78 {dimension_numbers = #tpu.dot_dimension_numbers<[1], [0], [0], [1], [0, 0, 1, 1], [], []>} : vector<16x16xf32>, vector<16x32xf32>, vector<16x32xf32> -> vector<16x32xf32>
    %285 = vector.broadcast %25 : vector<1x32xf32> to vector<16x32xf32>
    %286 = arith.mulf %284, %285 : vector<16x32xf32>
    %287 = arith.addf %269, %286 : vector<16x32xf32>
    %288 = vector.broadcast %32 : vector<1x32xf32> to vector<16x32xf32>
    %289 = arith.mulf %230, %288 : vector<16x32xf32>
    "tpu.trace_start"() <{level = 10 : i32, message = "ld,md->lm"}> : () -> ()
    %cst_79 = arith.constant dense<0.000000e+00> : vector<16x16xf32>
    %290 = tpu.matmul %289, %231, %cst_79 {dimension_numbers = #tpu.dot_dimension_numbers<[1], [1], [0], [0], [0, 0, 1, 0], [], []>} : vector<16x32xf32>, vector<16x32xf32>, vector<16x16xf32> -> vector<16x16xf32>
    "tpu.trace_stop"() : () -> ()
    %291 = arith.addf %290, %3 : vector<16x16xf32>
    %cst_80 = arith.constant dense<0xFF800000> : vector<16xf32>
    %292 = vector.multi_reduction <maximumf>, %291, %cst_80 [1] : vector<16x16xf32> to vector<16xf32>
    %293 = vector.shape_cast %292 : vector<16xf32> to vector<16x1xf32>
    %294 = vector.broadcast %293 : vector<16x1xf32> to vector<16x16xf32>
    %295 = arith.subf %291, %294 : vector<16x16xf32>
    %296 = math.exp %295 : vector<16x16xf32>
    %cst_81 = arith.constant dense<0.000000e+00> : vector<16xf32>
    %297 = vector.multi_reduction <add>, %296, %cst_81 [1] : vector<16x16xf32> to vector<16xf32>
    %298 = vector.shape_cast %297 : vector<16xf32> to vector<16x1xf32>
    %299 = tpu.reciprocal %298 {approx = true} : vector<16x1xf32> -> vector<16x1xf32>
    %300 = vector.broadcast %299 : vector<16x1xf32> to vector<16x16xf32>
    %301 = arith.mulf %296, %300 : vector<16x16xf32>
    %cst_82 = arith.constant dense<0.000000e+00> : vector<16x32xf32>
    %302 = tpu.matmul %301, %232, %cst_82 {dimension_numbers = #tpu.dot_dimension_numbers<[1], [0], [0], [1], [0, 0, 1, 1], [], []>} : vector<16x16xf32>, vector<16x32xf32>, vector<16x32xf32> -> vector<16x32xf32>
    %303 = vector.broadcast %32 : vector<1x32xf32> to vector<16x32xf32>
    %304 = arith.mulf %302, %303 : vector<16x32xf32>
    %305 = arith.addf %287, %304 : vector<16x32xf32>
    %c1_83 = arith.constant 1 : index
    %c0_84 = arith.constant 0 : index
    %c0_85 = arith.constant 0 : index
    %306 = vector.load %arg5[%c1_83, %c0_84, %c0_85] : memref<2x32x32xf32, #tpu.memory_space<vmem>>, vector<1x32x32xf32>
    %307 = vector.shape_cast %306 : vector<1x32x32xf32> to vector<32x32xf32>
    %cst_86 = arith.constant dense<0.000000e+00> : vector<16x32xf32>
    %308 = tpu.matmul %305, %307, %cst_86 {dimension_numbers = #tpu.dot_dimension_numbers<[1], [0], [0], [1], [0, 0, 1, 1], [], []>} : vector<16x32xf32>, vector<32x32xf32>, vector<16x32xf32> -> vector<16x32xf32>
    %309 = arith.addf %192, %308 : vector<16x32xf32>
    %310 = vector.broadcast %198 : vector<1x32xf32> to vector<16x32xf32>
    %311 = arith.addf %309, %310 : vector<16x32xf32>
    %cst_87 = arith.constant dense<0.000000e+00> : vector<16xf32>
    %312 = vector.multi_reduction <add>, %311, %cst_87 [1] : vector<16x32xf32> to vector<16xf32>
    %313 = vector.shape_cast %312 : vector<16xf32> to vector<16x1xf32>
    %cst_88 = arith.constant 3.125000e-02 : f32
    %314 = vector.broadcast %cst_88 : f32 to vector<16x1xf32>
    %315 = arith.mulf %313, %314 : vector<16x1xf32>
    %316 = arith.mulf %311, %311 : vector<16x32xf32>
    %cst_89 = arith.constant dense<0.000000e+00> : vector<16xf32>
    %317 = vector.multi_reduction <add>, %316, %cst_89 [1] : vector<16x32xf32> to vector<16xf32>
    %318 = vector.shape_cast %317 : vector<16xf32> to vector<16x1xf32>
    %cst_90 = arith.constant 3.125000e-02 : f32
    %319 = vector.broadcast %cst_90 : f32 to vector<16x1xf32>
    %320 = arith.mulf %318, %319 : vector<16x1xf32>
    %321 = arith.mulf %315, %315 : vector<16x1xf32>
    %322 = arith.subf %320, %321 : vector<16x1xf32>
    %323 = vector.broadcast %315 : vector<16x1xf32> to vector<16x32xf32>
    %324 = arith.subf %311, %323 : vector<16x32xf32>
    %cst_91 = arith.constant 9.99999974E-6 : f32
    %325 = vector.broadcast %cst_91 : f32 to vector<16x1xf32>
    %326 = arith.addf %322, %325 : vector<16x1xf32>
    %327 = math.rsqrt %326 : vector<16x1xf32>
    %328 = vector.broadcast %327 : vector<16x1xf32> to vector<16x32xf32>
    %329 = arith.mulf %324, %328 : vector<16x32xf32>
    %330 = vector.broadcast %199 : vector<1x32xf32> to vector<16x32xf32>
    %331 = arith.mulf %329, %330 : vector<16x32xf32>
    %332 = vector.broadcast %200 : vector<1x32xf32> to vector<16x32xf32>
    %333 = arith.addf %331, %332 : vector<16x32xf32>
    %c1_92 = arith.constant 1 : index
    %c0_93 = arith.constant 0 : index
    %c0_94 = arith.constant 0 : index
    %334 = vector.load %arg6[%c1_92, %c0_93, %c0_94] : memref<2x32x128xf32, #tpu.memory_space<vmem>>, vector<1x32x128xf32>
    %335 = vector.shape_cast %334 : vector<1x32x128xf32> to vector<32x128xf32>
    %cst_95 = arith.constant dense<0.000000e+00> : vector<16x128xf32>
    %336 = tpu.matmul %333, %335, %cst_95 {dimension_numbers = #tpu.dot_dimension_numbers<[1], [0], [0], [1], [0, 0, 1, 1], [], []>} : vector<16x32xf32>, vector<32x128xf32>, vector<16x128xf32> -> vector<16x128xf32>
    %337 = vector.broadcast %201 : vector<1x128xf32> to vector<16x128xf32>
    %338 = arith.addf %336, %337 : vector<16x128xf32>
    %cst_96 = arith.constant 1.702000e+00 : f32
    %339 = vector.broadcast %cst_96 : f32 to vector<16x128xf32>
    %340 = arith.mulf %339, %338 : vector<16x128xf32>
    %341 = arith.negf %340 : vector<16x128xf32>
    %342 = math.exp %341 : vector<16x128xf32>
    %cst_97 = arith.constant 1.000000e+00 : f32
    %343 = vector.broadcast %cst_97 : f32 to vector<16x128xf32>
    %344 = arith.addf %343, %342 : vector<16x128xf32>
    %345 = arith.divf %343, %344 : vector<16x128xf32>
    %346 = arith.mulf %338, %345 : vector<16x128xf32>
    %c1_98 = arith.constant 1 : index
    %c0_99 = arith.constant 0 : index
    %c0_100 = arith.constant 0 : index
    %347 = vector.load %arg7[%c1_98, %c0_99, %c0_100] : memref<2x128x32xf32, #tpu.memory_space<vmem>>, vector<1x128x32xf32>
    %348 = vector.shape_cast %347 : vector<1x128x32xf32> to vector<128x32xf32>
    %cst_101 = arith.constant dense<0.000000e+00> : vector<16x32xf32>
    %349 = tpu.matmul %346, %348, %cst_101 {dimension_numbers = #tpu.dot_dimension_numbers<[1], [0], [0], [1], [0, 0, 1, 1], [], []>} : vector<16x128xf32>, vector<128x32xf32>, vector<16x32xf32> -> vector<16x32xf32>
    %350 = arith.addf %311, %349 : vector<16x32xf32>
    %351 = vector.broadcast %202 : vector<1x32xf32> to vector<16x32xf32>
    %352 = arith.addf %350, %351 : vector<16x32xf32>
    %c0_102 = arith.constant 0 : index
    %c0_103 = arith.constant 0 : index
    %353 = vector.load %arg13[%c0_102, %c0_103] : memref<16x32xf32, #tpu.memory_space<vmem>>, vector<16x32xf32>
    tpu.vector_store %arg13[%c0_102, %c0_103], %352 {strides = array<i32>} : memref<16x32xf32, #tpu.memory_space<vmem>>, vector<16x32xf32>,
    %c0_104 = arith.constant 0 : index
    %354 = memref.load %arg0[%c0_104] : memref<2xi32, #tpu.memory_space<smem>>
    %c0_i32_105 = arith.constant 0 : i32
    %355 = arith.addi %354, %c0_i32_105 : i32
    %356 = arith.index_cast %355 : i32 to index
    %c0_106 = arith.constant 0 : index
    %357 = vector.load %arg13[%356, %c0_106] : memref<16x32xf32, #tpu.memory_space<vmem>>, vector<1x32xf32>
    %c1_107 = arith.constant 1 : index
    %358 = memref.load %arg0[%c1_107] : memref<2xi32, #tpu.memory_space<smem>>
    %c8_i32_108 = arith.constant 8 : i32
    %359 = arith.addi %358, %c8_i32_108 : i32
    %360 = arith.index_cast %359 : i32 to index
    %c0_109 = arith.constant 0 : index
    %361 = vector.load %arg13[%360, %c0_109] : memref<16x32xf32, #tpu.memory_space<vmem>>, vector<1x32xf32>
    %362 = tpu.concatenate %357, %361 in 0 : vector<1x32xf32>, vector<1x32xf32> -> vector<2x32xf32>
    %c0_110 = arith.constant 0 : index
    %c0_111 = arith.constant 0 : index
    %363 = vector.load %arg9[%c0_110, %c0_111] : memref<1x32xf32, #tpu.memory_space<vmem>>, vector<1x32xf32>
    %c0_112 = arith.constant 0 : index
    %c0_113 = arith.constant 0 : index
    %364 = vector.load %arg10[%c0_112, %c0_113] : memref<1x32xf32, #tpu.memory_space<vmem>>, vector<1x32xf32>
    %cst_114 = arith.constant dense<0.000000e+00> : vector<2xf32>
    %365 = vector.multi_reduction <add>, %362, %cst_114 [1] : vector<2x32xf32> to vector<2xf32>
    %366 = vector.shape_cast %365 : vector<2xf32> to vector<2x1xf32>
    %cst_115 = arith.constant 3.125000e-02 : f32
    %367 = vector.broadcast %cst_115 : f32 to vector<2x1xf32>
    %368 = arith.mulf %366, %367 : vector<2x1xf32>
    %369 = arith.mulf %362, %362 : vector<2x32xf32>
    %cst_116 = arith.constant dense<0.000000e+00> : vector<2xf32>
    %370 = vector.multi_reduction <add>, %369, %cst_116 [1] : vector<2x32xf32> to vector<2xf32>
    %371 = vector.shape_cast %370 : vector<2xf32> to vector<2x1xf32>
    %cst_117 = arith.constant 3.125000e-02 : f32
    %372 = vector.broadcast %cst_117 : f32 to vector<2x1xf32>
    %373 = arith.mulf %371, %372 : vector<2x1xf32>
    %374 = arith.mulf %368, %368 : vector<2x1xf32>
    %375 = arith.subf %373, %374 : vector<2x1xf32>
    %376 = vector.broadcast %368 : vector<2x1xf32> to vector<2x32xf32>
    %377 = arith.subf %362, %376 : vector<2x32xf32>
    %cst_118 = arith.constant 9.99999974E-6 : f32
    %378 = vector.broadcast %cst_118 : f32 to vector<2x1xf32>
    %379 = arith.addf %375, %378 : vector<2x1xf32>
    %380 = math.rsqrt %379 : vector<2x1xf32>
    %381 = vector.broadcast %380 : vector<2x1xf32> to vector<2x32xf32>
    %382 = arith.mulf %377, %381 : vector<2x32xf32>
    %383 = vector.broadcast %363 : vector<1x32xf32> to vector<2x32xf32>
    %384 = arith.mulf %382, %383 : vector<2x32xf32>
    %385 = vector.broadcast %364 : vector<1x32xf32> to vector<2x32xf32>
    %386 = arith.addf %384, %385 : vector<2x32xf32>
    %c0_119 = arith.constant 0 : index
    %c0_120 = arith.constant 0 : index
    %387 = vector.load %arg11[%c0_119, %c0_120] : memref<32x32xf32, #tpu.memory_space<vmem>>, vector<32x32xf32>
    %cst_121 = arith.constant dense<0.000000e+00> : vector<2x32xf32>
    %388 = tpu.matmul %386, %387, %cst_121 {dimension_numbers = #tpu.dot_dimension_numbers<[1], [0], [0], [1], [0, 0, 1, 1], [], []>} : vector<2x32xf32>, vector<32x32xf32>, vector<2x32xf32> -> vector<2x32xf32>
    %c0_122 = arith.constant 0 : index
    %c0_123 = arith.constant 0 : index
    %389 = vector.load %arg12[%c0_122, %c0_123] : memref<2x32xf32, #tpu.memory_space<vmem>>, vector<2x32xf32>
    tpu.vector_store %arg12[%c0_122, %c0_123], %388 {strides = array<i32>} : memref<2x32xf32, #tpu.memory_space<vmem>>, vector<2x32xf32>,
    return
  }
}

</mosaic_0001>

<llo_original>
// kernel: text_encoder_forward.1
$region0: #{text_encoder_forward.1}
  #allocation0 [shape = 'u32[]', space=smem, size = 0x4, offset = 0x4, fixed_abs, tag = 'smem constant byte address 0x4 - core index']
  #allocation1 [shape = 'u32[72,128]{1,0:T(1,128)}', space=vmem, size = 0x9000, scoped, tag = 'internal scratch']
  #allocation2 [shape = 'f32[16,32]{1,0:T(8,128)}', space=vmem, size = 0x2000, scoped, tag = 'scratch operand']
  %s0 = inlined_call_operand.vmem [shape: s32[2], index: 0, kind: input, shape index: {}]
  %s1 = inlined_call_operand.vmem [shape: f32[16,32], index: 1, kind: input, shape index: {}]
  %s2 = inlined_call_operand.vmem [shape: f32[16,32], index: 2, kind: input, shape index: {}]
  %s3 = inlined_call_operand.vmem [shape: f32[16,16], index: 3, kind: input, shape index: {}]
  %s4 = inlined_call_operand.vmem [shape: f32[2,32,96], index: 4, kind: input, shape index: {}]
  %s5 = inlined_call_operand.vmem [shape: f32[2,32,32], index: 5, kind: input, shape index: {}]
  %s6 = inlined_call_operand.vmem [shape: f32[2,32,128], index: 6, kind: input, shape index: {}]
  %s7 = inlined_call_operand.vmem [shape: f32[2,128,32], index: 7, kind: input, shape index: {}]
  %s8 = inlined_call_operand.vmem [shape: f32[2,8,128], index: 8, kind: input, shape index: {}]
  %s9 = inlined_call_operand.vmem [shape: f32[1,32], index: 9, kind: input, shape index: {}]
  %s10 = inlined_call_operand.vmem [shape: f32[1,32], index: 10, kind: input, shape index: {}]
  %s11 = inlined_call_operand.vmem [shape: f32[32,32], index: 11, kind: input, shape index: {}]
  %s12 = inlined_call_operand.hbm [shape: f32[2,32], index: 12, kind: output, shape index: {}]
  %s13 = sld [smem:[#allocation0]]
  $region62: #{text_encoder_forward.1} parent=0
    _
  %s15 = ssub.s32 1, %s13
  %s16 = scalar_select 0, %s15, %s13
  $region1: #{text_encoder_forward.1} parent=0
    #allocation3 [shape = 'u8[512]{0}', space=smem, size = 0x200, scoped, tag = 'input window, operand 0, single buffered']
    #allocation4 [shape = 's32[1]{0}', space=sflag, size = 0x4, scoped, tag = 'scoped memory for text_encoder_forward.1']
    #allocation5 [shape = 's32[1]{0}', space=sflag, size = 0x4, scoped, tag = 'scoped memory for text_encoder_forward.1']
    #allocation6 [shape = 'u8[1024]{0}', space=vmem, size = 0x400, scoped, tag = 'output window, operand 0, single buffered']
    %17 = vsyncpa [#allocation5], 0
    %18 = vsyncpa [#allocation4], 0
    // Predicated region
    $region2: #{text_encoder_forward.1} parent=1 // pred_check
      _
    $region3: #{text_encoder_forward.1} parent=1 // pred_check_branch
      %20 = sbr.rel (0) target = $region5
    $region4: #{text_encoder_forward.1} parent=1 // pred_region
      %22 = vsyncadd [#allocation5], 0
      %s24 = sshll.u32 %s0, 4
      %s25 = int_to_ptr.vmem [resolvable:$true] %s24
      %27 = dma.vmem_to_smem %s25, 16, [#allocation3], [#allocation5]
    $region5: #{text_encoder_forward.1} parent=1 // pred_fallthru
      _
    // Predicated region
    $region6: #{text_encoder_forward.1} parent=1 // pred_check
      _
    $region7: #{text_encoder_forward.1} parent=1 // pred_check_branch
      %29 = sbr.rel (0) target = $region9
    $region8: #{text_encoder_forward.1} parent=1 // pred_region
      _
    $region9: #{text_encoder_forward.1} parent=1 // pred_fallthru
      _
    // Predicated region
    $region10: #{text_encoder_forward.1} parent=1 // pred_check
      _
    $region11: #{text_encoder_forward.1} parent=1 // pred_check_branch
      %31 = sbr.rel (0) target = $region13
    $region12: #{text_encoder_forward.1} parent=1 // pred_region
      _
    $region13: #{text_encoder_forward.1} parent=1 // pred_fallthru
      _
    // Predicated region
    $region14: #{text_encoder_forward.1} parent=1 // pred_check
      _
    $region15: #{text_encoder_forward.1} parent=1 // pred_check_branch
      %33 = sbr.rel (0) target = $region17
    $region16: #{text_encoder_forward.1} parent=1 // pred_region
      _
    $region17: #{text_encoder_forward.1} parent=1 // pred_fallthru
      _
    // Predicated region
    $region18: #{text_encoder_forward.1} parent=1 // pred_check
      _
    $region19: #{text_encoder_forward.1} parent=1 // pred_check_branch
      %35 = sbr.rel (0) target = $region21
    $region20: #{text_encoder_forward.1} parent=1 // pred_region
      _
    $region21: #{text_encoder_forward.1} parent=1 // pred_fallthru
      _
    // Predicated region
    $region22: #{text_encoder_forward.1} parent=1 // pred_check
      _
    $region23: #{text_encoder_forward.1} parent=1 // pred_check_branch
      %37 = sbr.rel (0) target = $region25
    $region24: #{text_encoder_forward.1} parent=1 // pred_region
      _
    $region25: #{text_encoder_forward.1} parent=1 // pred_fallthru
      _
    // Predicated region
    $region26: #{text_encoder_forward.1} parent=1 // pred_check
      _
    $region27: #{text_encoder_forward.1} parent=1 // pred_check_branch
      %39 = sbr.rel (0) target = $region29
    $region28: #{text_encoder_forward.1} parent=1 // pred_region
      _
    $region29: #{text_encoder_forward.1} parent=1 // pred_fallthru
      _
    // Predicated region
    $region30: #{text_encoder_forward.1} parent=1 // pred_check
      _
    $region31: #{text_encoder_forward.1} parent=1 // pred_check_branch
      %41 = sbr.rel (0) target = $region33
    $region32: #{text_encoder_forward.1} parent=1 // pred_region
      _
    $region33: #{text_encoder_forward.1} parent=1 // pred_fallthru
      _
    // Predicated region
    $region34: #{text_encoder_forward.1} parent=1 // pred_check
      _
    $region35: #{text_encoder_forward.1} parent=1 // pred_check_branch
      %43 = sbr.rel (0) target = $region37
    $region36: #{text_encoder_forward.1} parent=1 // pred_region
      _
    $region37: #{text_encoder_forward.1} parent=1 // pred_fallthru
      _
    // Predicated region
    $region38: #{text_encoder_forward.1} parent=1 // pred_check
      _
    $region39: #{text_encoder_forward.1} parent=1 // pred_check_branch
      %45 = sbr.rel (0) target = $region41
    $region40: #{text_encoder_forward.1} parent=1 // pred_region
      _
    $region41: #{text_encoder_forward.1} parent=1 // pred_fallthru
      _
    // Predicated region
    $region42: #{text_encoder_forward.1} parent=1 // pred_check
      _
    $region43: #{text_encoder_forward.1} parent=1 // pred_check_branch
      %47 = sbr.rel (0) target = $region45
    $region44: #{text_encoder_forward.1} parent=1 // pred_region
      _
    $region45: #{text_encoder_forward.1} parent=1 // pred_fallthru
      _
    // Predicated region
    $region46: #{text_encoder_forward.1} parent=1 // pred_check
      _
    $region47: #{text_encoder_forward.1} parent=1 // pred_check_branch
      %49 = sbr.rel (0) target = $region49
    $region48: #{text_encoder_forward.1} parent=1 // pred_region
      _
    $region49: #{text_encoder_forward.1} parent=1 // pred_fallthru
      _
    // Predicated region
    $region50: #{text_encoder_forward.1} parent=1 // pred_check
      _
    $region51: #{text_encoder_forward.1} parent=1 // pred_check_branch
      %51 = sbr.rel (0) target = $region53
    $region52: #{text_encoder_forward.1} parent=1 // pred_region
      %53 = dma.done [#allocation5], 16
    $region53: #{text_encoder_forward.1} parent=1 // pred_fallthru
      _
    %54 = sfence
    %v55 = vld [vmem:[%s1] sm:$0xff]
    %v56 = vld [vmem:[%s1 + $0x8] sm:$0xff]
    %v57 = vld [vmem:[%s2] sm:$0xff]
    %v58 = vld [vmem:[%s2 + $0x8] sm:$0xff]
    %v59 = vadd.f32 %v55, %v57
    %v60 = vadd.f32 %v56, %v58
    %v61 = vld [vmem:[%s3] sm:$0xff]
    %v62 = vld [vmem:[%s3 + $0x8] sm:$0xff]
    %v63 = vlaneseq
    %v64 = vand.u32 %v63, 127
    %vm65 = vcmp.ge.s32.totalorder %v64, 0
    %vm66 = vcmp.lt.s32.totalorder %v64, 8
    %vm67 = vmand %vm65, %vm66
    %v68 = vsel %vm67, 1, 0
    %v69 = vcvt.s32.f32 %v68
    %vm70 = vcmp.ge.s32.totalorder %v64, 8
    %vm71 = vcmp.lt.s32.totalorder %v64, 16
    %vm72 = vmand %vm70, %vm71
    %v73 = vsel %vm72, 1, 0
    %v74 = vcvt.s32.f32 %v73
    %vm75 = vcmp.ge.s32.totalorder %v64, 16
    %vm76 = vcmp.lt.s32.totalorder %v64, 24
    %vm77 = vmand %vm75, %vm76
    %v78 = vsel %vm77, 1, 0
    %v79 = vcvt.s32.f32 %v78
    %vm80 = vcmp.ge.s32.totalorder %v64, 24
    %vm81 = vcmp.lt.s32.totalorder %v64, 32
    %vm82 = vmand %vm80, %vm81
    %v83 = vsel %vm82, 1, 0
    %v84 = vcvt.s32.f32 %v83
    %v85 = vld [vmem:[%s8] sm:$0xff]
    %vm86 = vcmask 261120
    %v87 = vsel %vm86, %v59, 0.0
    %88 = vadd.xlane.f32.xlu0 %v87
    %v89 = vpop.xlane.xlu0 %88
    %v90 = vsel %vm86, %v60, 0.0
    %91 = vadd.xlane.f32.xlu0 %v90
    %v92 = vpop.xlane.xlu0 %91
    %v93 = vmul.f32 %v89, 0.03125
    %v94 = vmul.f32 %v92, 0.03125
    %v95 = vmul.f32 %v59, %v59
    %v96 = vmul.f32 %v60, %v60
    %v97 = vsel %vm86, %v95, 0.0
    %98 = vadd.xlane.f32.xlu0 %v97
    %v99 = vpop.xlane.xlu0 %98
    %v100 = vsel %vm86, %v96, 0.0
    %101 = vadd.xlane.f32.xlu0 %v100
    %v102 = vpop.xlane.xlu0 %101
    %v103 = vmul.f32 %v99, 0.03125
    %v104 = vmul.f32 %v102, 0.03125
    %v105 = vmul.f32 %v93, %v93
    %v106 = vmul.f32 %v94, %v94
    %v107 = vsub.f32 %v103, %v105
    %v108 = vsub.f32 %v104, %v106
    %v109 = vsub.f32 %v59, %v93
    %v110 = vsub.f32 %v60, %v94
    %v111 = vadd.f32 %v107, 1e-05
    %v112 = vadd.f32 %v108, 1e-05
    %v113 = vrsqrt.pop %v111
    %v114 = vmul.f32 %v113, %v111
    %v115 = vmul.f32 %v114, %v113
    %v116 = vmul.f32 0.5, %v115
    %v117 = vsub.f32 1.5, %v116
    %v118 = vmul.f32 %v113, %v117
    %vm119 = vweird.f32 %v111
    %vm120 = vweird.f32 %v113
    %vm121 = vmor %vm119, %vm120
    %v122 = vsel %vm121, %v113, %v118
    %v123 = vrsqrt.pop %v112
    %v124 = vmul.f32 %v123, %v112
    %v125 = vmul.f32 %v124, %v123
    %v126 = vmul.f32 0.5, %v125
    %v127 = vsub.f32 1.5, %v126
    %v128 = vmul.f32 %v123, %v127
    %vm129 = vweird.f32 %v112
    %vm130 = vweird.f32 %v123
    %vm131 = vmor %vm129, %vm130
    %v132 = vsel %vm131, %v123, %v128
    %v133 = vmul.f32 %v109, %v122
    %v134 = vmul.f32 %v110, %v132
    %v135 = vperm.slane %v85, 0
    %v136 = vmul.f32 %v133, %v135
    %v137 = vmul.f32 %v134, %v135
    %v138 = vperm.slane %v85, 1
    %v139 = vadd.f32 %v136, %v138
    %v140 = vadd.f32 %v137, %v138
    %v141 = vld [vmem:[%s4] sm:$0xff]
    %v142 = vld [vmem:[%s4 + $0x8] sm:$0xff]
    %v143 = vld [vmem:[%s4 + $0x10] sm:$0xff]
    %v144 = vld [vmem:[%s4 + $0x18] sm:$0xff]
    %v145 = vperm.slane %v85, 2
    %v147 = vsel %vm86, %v139, 0
    %v150 = vsel %vm86, %v140, 0
    %152 = vmatpush.msra.mxu0 0.0
    %153 = vmatpush.msra.mxu0 0.0
    %154 = vmatpush.msra.mxu0 0.0
    %155 = vmatpush.msra.mxu0 0.0
    %156 = vmatpush.msra.mxu0 0.0
    %157 = vmatpush.msra.mxu0 0.0
    %158 = vmatpush.msra.mxu0 0.0
    %159 = vmatpush.msra.mxu0 0.0
    %160 = vmatpush.msra.mxu0 0.0
    %161 = vmatpush.msra.mxu0 0.0
    %162 = vmatpush.msra.mxu0 0.0
    %163 = vmatpush.msra.mxu0 0.0
    %164 = vmatpush.msra.mxu0 %v144
    %165 = vmatpush.msra.mxu0 %v143
    %166 = vmatpush.msra.mxu0 %v142
    %167 = vmatpush.msra.mxu0 %v141
    %168 = vmatmul.f32.gmra.mxu0 %v147
    %v169 = vpop.f32.mrf.mxu0
    %v170 = vadd.f32 %v145, %v169
    %171 = vmatmul.f32.gmra.mxu0 %v150
    %v172 = vpop.f32.mrf.mxu0
    %v173 = vadd.f32 %v145, %v172
    %174 = vdwg.mxu0
    %v175 = vmul.f32 %v170, %v69
    %v176 = vmul.f32 %v173, %v69
    %179 = vrot.lane.b32.xlu0 %v170, 96
    %v180 = vpop.permute.xlu0 %179
    %181 = vrot.lane.b32.xlu0 %v173, 96
    %v182 = vpop.permute.xlu0 %181
    %v184 = vsel %vm86, %v175, 0
    %v187 = vsel %vm86, %v176, 0
    %v189 = vsel %vm86, %v180, 0
    %v191 = vsel %vm86, %v182, 0
    %193 = vmatpush.xpose.msra.mxu0 0.0
    %194 = vmatpush.xpose.msra.mxu0 0.0
    %195 = vmatpush.xpose.msra.mxu0 0.0
    %196 = vmatpush.xpose.msra.mxu0 0.0
    %197 = vmatpush.xpose.msra.mxu0 0.0
    %198 = vmatpush.xpose.msra.mxu0 0.0
    %199 = vmatpush.xpose.msra.mxu0 0.0
    %200 = vmatpush.xpose.msra.mxu0 0.0
    %201 = vmatpush.xpose.msra.mxu0 0.0
    %202 = vmatpush.xpose.msra.mxu0 0.0
    %203 = vmatpush.xpose.msra.mxu0 0.0
    %204 = vmatpush.xpose.msra.mxu0 0.0
    %205 = vmatpush.xpose.msra.mxu0 0.0
    %206 = vmatpush.xpose.msra.mxu0 0.0
    %207 = vmatpush.xpose.msra.mxu0 %v191
    %208 = vmatpush.xpose.msra.mxu0 %v189
    %209 = vmatmul.f32.gmra.mxu0 %v184
    %v210 = vpop.f32.mrf.mxu0
    %v211 = vadd.f32 %v61, %v210
    %212 = vmatmul.f32.gmra.mxu0 %v187
    %v213 = vpop.f32.mrf.mxu0
    %v214 = vadd.f32 %v62, %v213
    %215 = vdwg.mxu0
    %vm216 = vcmask 130048
    %v217 = vsel %vm216, %v211, -inf
    %218 = vmax.xlane.f32.xlu0 %v217
    %v219 = vpop.xlane.xlu0 %218
    %v220 = vsel %vm216, %v214, -inf
    %221 = vmax.xlane.f32.xlu0 %v220
    %v222 = vpop.xlane.xlu0 %221
    %v223 = vsub.f32 %v211, %v219
    %v224 = vsub.f32 %v214, %v222
    %v225 = vmul.f32 %v223, 1.442695
    %v226 = vpow.pop %v225
    %v227 = vmul.f32 %v224, 1.442695
    %v228 = vpow.pop %v227
    %v229 = vsel %vm216, %v226, 0.0
    %230 = vadd.xlane.f32.xlu0 %v229
    %v231 = vpop.xlane.xlu0 %230
    %v232 = vsel %vm216, %v228, 0.0
    %233 = vadd.xlane.f32.xlu0 %v232
    %v234 = vpop.xlane.xlu0 %233
    %v235 = vrcp.pop %v231
    %v236 = vrcp.pop %v234
    %v237 = vmul.f32 %v226, %v235
    %v238 = vmul.f32 %v228, %v236
    %239 = vrot.lane.b32.xlu0 %v170, 64
    %v240 = vpop.permute.xlu0 %239
    %241 = vrot.lane.b32.xlu0 %v173, 64
    %v242 = vpop.permute.xlu0 %241
    %v246 = vsel %vm216, %v237, 0
    %v249 = vsel %vm216, %v238, 0
    %251 = vmatpush.msra.mxu0 0.0
    %252 = vmatpush.msra.mxu0 0.0
    %253 = vmatpush.msra.mxu0 0.0
    %254 = vmatpush.msra.mxu0 0.0
    %255 = vmatpush.msra.mxu0 0.0
    %256 = vmatpush.msra.mxu0 0.0
    %257 = vmatpush.msra.mxu0 0.0
    %258 = vmatpush.msra.mxu0 0.0
    %259 = vmatpush.msra.mxu0 0.0
    %260 = vmatpush.msra.mxu0 0.0
    %261 = vmatpush.msra.mxu0 0.0
    %262 = vmatpush.msra.mxu0 0.0
    %263 = vmatpush.msra.mxu0 0.0
    %264 = vmatpush.msra.mxu0 0.0
    %265 = vmatpush.msra.mxu0 %v242
    %266 = vmatpush.msra.mxu0 %v240
    %267 = vmatmul.f32.gmra.mxu0 %v246
    %v268 = vpop.f32.mrf.mxu0
    %v269 = vadd.f32 0.0, %v268
    %270 = vmatmul.f32.gmra.mxu0 %v249
    %v271 = vpop.f32.mrf.mxu0
    %v272 = vadd.f32 0.0, %v271
    %273 = vdwg.mxu0
    %v274 = vmul.f32 %v269, %v69
    %v275 = vmul.f32 %v272, %v69
    %v276 = vadd.f32 %v274, 0.0
    %v277 = vadd.f32 %v275, 0.0
    %v278 = vmul.f32 %v170, %v74
    %v279 = vmul.f32 %v173, %v74
    %v281 = vsel %vm86, %v278, 0
    %v284 = vsel %vm86, %v279, 0
    %286 = vmatpush.xpose.msra.mxu0 0.0
    %287 = vmatpush.xpose.msra.mxu0 0.0
    %288 = vmatpush.xpose.msra.mxu0 0.0
    %289 = vmatpush.xpose.msra.mxu0 0.0
    %290 = vmatpush.xpose.msra.mxu0 0.0
    %291 = vmatpush.xpose.msra.mxu0 0.0
    %292 = vmatpush.xpose.msra.mxu0 0.0
    %293 = vmatpush.xpose.msra.mxu0 0.0
    %294 = vmatpush.xpose.msra.mxu0 0.0
    %295 = vmatpush.xpose.msra.mxu0 0.0
    %296 = vmatpush.xpose.msra.mxu0 0.0
    %297 = vmatpush.xpose.msra.mxu0 0.0
    %298 = vmatpush.xpose.msra.mxu0 0.0
    %299 = vmatpush.xpose.msra.mxu0 0.0
    %300 = vmatpush.xpose.msra.mxu0 %v191
    %301 = vmatpush.xpose.msra.mxu0 %v189
    %302 = vmatmul.f32.gmra.mxu0 %v281
    %v303 = vpop.f32.mrf.mxu0
    %v304 = vadd.f32 %v61, %v303
    %305 = vmatmul.f32.gmra.mxu0 %v284
    %v306 = vpop.f32.mrf.mxu0
    %v307 = vadd.f32 %v62, %v306
    %308 = vdwg.mxu0
    %v309 = vsel %vm216, %v304, -inf
    %310 = vmax.xlane.f32.xlu0 %v309
    %v311 = vpop.xlane.xlu0 %310
    %v312 = vsel %vm216, %v307, -inf
    %313 = vmax.xlane.f32.xlu0 %v312
    %v314 = vpop.xlane.xlu0 %313
    %v315 = vsub.f32 %v304, %v311
    %v316 = vsub.f32 %v307, %v314
    %v317 = vmul.f32 %v315, 1.442695
    %v318 = vpow.pop %v317
    %v319 = vmul.f32 %v316, 1.442695
    %v320 = vpow.pop %v319
    %v321 = vsel %vm216, %v318, 0.0
    %322 = vadd.xlane.f32.xlu0 %v321
    %v323 = vpop.xlane.xlu0 %322
    %v324 = vsel %vm216, %v320, 0.0
    %325 = vadd.xlane.f32.xlu0 %v324
    %v326 = vpop.xlane.xlu0 %325
    %v327 = vrcp.pop %v323
    %v328 = vrcp.pop %v326
    %v329 = vmul.f32 %v318, %v327
    %v330 = vmul.f32 %v320, %v328
    %v332 = vsel %vm216, %v329, 0
    %v335 = vsel %vm216, %v330, 0
    %337 = vmatpush.msra.mxu0 0.0
    %338 = vmatpush.msra.mxu0 0.0
    %339 = vmatpush.msra.mxu0 0.0
    %340 = vmatpush.msra.mxu0 0.0
    %341 = vmatpush.msra.mxu0 0.0
    %342 = vmatpush.msra.mxu0 0.0
    %343 = vmatpush.msra.mxu0 0.0
    %344 = vmatpush.msra.mxu0 0.0
    %345 = vmatpush.msra.mxu0 0.0
    %346 = vmatpush.msra.mxu0 0.0
    %347 = vmatpush.msra.mxu0 0.0
    %348 = vmatpush.msra.mxu0 0.0
    %349 = vmatpush.msra.mxu0 0.0
    %350 = vmatpush.msra.mxu0 0.0
    %351 = vmatpush.msra.mxu0 %v242
    %352 = vmatpush.msra.mxu0 %v240
    %353 = vmatmul.f32.gmra.mxu0 %v332
    %v354 = vpop.f32.mrf.mxu0
    %v355 = vadd.f32 0.0, %v354
    %356 = vmatmul.f32.gmra.mxu0 %v335
    %v357 = vpop.f32.mrf.mxu0
    %v358 = vadd.f32 0.0, %v357
    %359 = vdwg.mxu0
    %v360 = vmul.f32 %v355, %v74
    %v361 = vmul.f32 %v358, %v74
    %v362 = vadd.f32 %v276, %v360
    %v363 = vadd.f32 %v277, %v361
    %v364 = vmul.f32 %v170, %v79
    %v365 = vmul.f32 %v173, %v79
    %v367 = vsel %vm86, %v364, 0
    %v370 = vsel %vm86, %v365, 0
    %372 = vmatpush.xpose.msra.mxu0 0.0
    %373 = vmatpush.xpose.msra.mxu0 0.0
    %374 = vmatpush.xpose.msra.mxu0 0.0
    %375 = vmatpush.xpose.msra.mxu0 0.0
    %376 = vmatpush.xpose.msra.mxu0 0.0
    %377 = vmatpush.xpose.msra.mxu0 0.0
    %378 = vmatpush.xpose.msra.mxu0 0.0
    %379 = vmatpush.xpose.msra.mxu0 0.0
    %380 = vmatpush.xpose.msra.mxu0 0.0
    %381 = vmatpush.xpose.msra.mxu0 0.0
    %382 = vmatpush.xpose.msra.mxu0 0.0
    %383 = vmatpush.xpose.msra.mxu0 0.0
    %384 = vmatpush.xpose.msra.mxu0 0.0
    %385 = vmatpush.xpose.msra.mxu0 0.0
    %386 = vmatpush.xpose.msra.mxu0 %v191
    %387 = vmatpush.xpose.msra.mxu0 %v189
    %388 = vmatmul.f32.gmra.mxu0 %v367
    %v389 = vpop.f32.mrf.mxu0
    %v390 = vadd.f32 %v61, %v389
    %391 = vmatmul.f32.gmra.mxu0 %v370
    %v392 = vpop.f32.mrf.mxu0
    %v393 = vadd.f32 %v62, %v392
    %394 = vdwg.mxu0
    %v395 = vsel %vm216, %v390, -inf
    %396 = vmax.xlane.f32.xlu0 %v395
    %v397 = vpop.xlane.xlu0 %396
    %v398 = vsel %vm216, %v393, -inf
    %399 = vmax.xlane.f32.xlu0 %v398
    %v400 = vpop.xlane.xlu0 %399
    %v401 = vsub.f32 %v390, %v397
    %v402 = vsub.f32 %v393, %v400
    %v403 = vmul.f32 %v401, 1.442695
    %v404 = vpow.pop %v403
    %v405 = vmul.f32 %v402, 1.442695
    %v406 = vpow.pop %v405
    %v407 = vsel %vm216, %v404, 0.0
    %408 = vadd.xlane.f32.xlu0 %v407
    %v409 = vpop.xlane.xlu0 %408
    %v410 = vsel %vm216, %v406, 0.0
    %411 = vadd.xlane.f32.xlu0 %v410
    %v412 = vpop.xlane.xlu0 %411
    %v413 = vrcp.pop %v409
    %v414 = vrcp.pop %v412
    %v415 = vmul.f32 %v404, %v413
    %v416 = vmul.f32 %v406, %v414
    %v418 = vsel %vm216, %v415, 0
    %v421 = vsel %vm216, %v416, 0
    %423 = vmatpush.msra.mxu0 0.0
    %424 = vmatpush.msra.mxu0 0.0
    %425 = vmatpush.msra.mxu0 0.0
    %426 = vmatpush.msra.mxu0 0.0
    %427 = vmatpush.msra.mxu0 0.0
    %428 = vmatpush.msra.mxu0 0.0
    %429 = vmatpush.msra.mxu0 0.0
    %430 = vmatpush.msra.mxu0 0.0
    %431 = vmatpush.msra.mxu0 0.0
    %432 = vmatpush.msra.mxu0 0.0
    %433 = vmatpush.msra.mxu0 0.0
    %434 = vmatpush.msra.mxu0 0.0
    %435 = vmatpush.msra.mxu0 0.0
    %436 = vmatpush.msra.mxu0 0.0
    %437 = vmatpush.msra.mxu0 %v242
    %438 = vmatpush.msra.mxu0 %v240
    %439 = vmatmul.f32.gmra.mxu0 %v418
    %v440 = vpop.f32.mrf.mxu0
    %v441 = vadd.f32 0.0, %v440
    %442 = vmatmul.f32.gmra.mxu0 %v421
    %v443 = vpop.f32.mrf.mxu0
    %v444 = vadd.f32 0.0, %v443
    %445 = vdwg.mxu0
    %v446 = vmul.f32 %v441, %v79
    %v447 = vmul.f32 %v444, %v79
    %v448 = vadd.f32 %v362, %v446
    %v449 = vadd.f32 %v363, %v447
    %v450 = vmul.f32 %v170, %v84
    %v451 = vmul.f32 %v173, %v84
    %v453 = vsel %vm86, %v450, 0
    %v456 = vsel %vm86, %v451, 0
    %458 = vmatpush.xpose.msra.mxu0 0.0
    %459 = vmatpush.xpose.msra.mxu0 0.0
    %460 = vmatpush.xpose.msra.mxu0 0.0
    %461 = vmatpush.xpose.msra.mxu0 0.0
    %462 = vmatpush.xpose.msra.mxu0 0.0
    %463 = vmatpush.xpose.msra.mxu0 0.0
    %464 = vmatpush.xpose.msra.mxu0 0.0
    %465 = vmatpush.xpose.msra.mxu0 0.0
    %466 = vmatpush.xpose.msra.mxu0 0.0
    %467 = vmatpush.xpose.msra.mxu0 0.0
    %468 = vmatpush.xpose.msra.mxu0 0.0
    %469 = vmatpush.xpose.msra.mxu0 0.0
    %470 = vmatpush.xpose.msra.mxu0 0.0
    %471 = vmatpush.xpose.msra.mxu0 0.0
    %472 = vmatpush.xpose.msra.mxu0 %v191
    %473 = vmatpush.xpose.msra.mxu0 %v189
    %474 = vmatmul.f32.gmra.mxu0 %v453
    %v475 = vpop.f32.mrf.mxu0
    %v476 = vadd.f32 %v61, %v475
    %477 = vmatmul.f32.gmra.mxu0 %v456
    %v478 = vpop.f32.mrf.mxu0
    %v479 = vadd.f32 %v62, %v478
    %480 = vdwg.mxu0
    %v481 = vsel %vm216, %v476, -inf
    %482 = vmax.xlane.f32.xlu0 %v481
    %v483 = vpop.xlane.xlu0 %482
    %v484 = vsel %vm216, %v479, -inf
    %485 = vmax.xlane.f32.xlu0 %v484
    %v486 = vpop.xlane.xlu0 %485
    %v487 = vsub.f32 %v476, %v483
    %v488 = vsub.f32 %v479, %v486
    %v489 = vmul.f32 %v487, 1.442695
    %v490 = vpow.pop %v489
    %v491 = vmul.f32 %v488, 1.442695
    %v492 = vpow.pop %v491
    %v493 = vsel %vm216, %v490, 0.0
    %494 = vadd.xlane.f32.xlu0 %v493
    %v495 = vpop.xlane.xlu0 %494
    %v496 = vsel %vm216, %v492, 0.0
    %497 = vadd.xlane.f32.xlu0 %v496
    %v498 = vpop.xlane.xlu0 %497
    %v499 = vrcp.pop %v495
    %v500 = vrcp.pop %v498
    %v501 = vmul.f32 %v490, %v499
    %v502 = vmul.f32 %v492, %v500
    %v504 = vsel %vm216, %v501, 0
    %v507 = vsel %vm216, %v502, 0
    %509 = vmatpush.msra.mxu0 0.0
    %510 = vmatpush.msra.mxu0 0.0
    %511 = vmatpush.msra.mxu0 0.0
    %512 = vmatpush.msra.mxu0 0.0
    %513 = vmatpush.msra.mxu0 0.0
    %514 = vmatpush.msra.mxu0 0.0
    %515 = vmatpush.msra.mxu0 0.0
    %516 = vmatpush.msra.mxu0 0.0
    %517 = vmatpush.msra.mxu0 0.0
    %518 = vmatpush.msra.mxu0 0.0
    %519 = vmatpush.msra.mxu0 0.0
    %520 = vmatpush.msra.mxu0 0.0
    %521 = vmatpush.msra.mxu0 0.0
    %522 = vmatpush.msra.mxu0 0.0
    %523 = vmatpush.msra.mxu0 %v242
    %524 = vmatpush.msra.mxu0 %v240
    %525 = vmatmul.f32.gmra.mxu0 %v504
    %v526 = vpop.f32.mrf.mxu0
    %v527 = vadd.f32 0.0, %v526
    %528 = vmatmul.f32.gmra.mxu0 %v507
    %v529 = vpop.f32.mrf.mxu0
    %v530 = vadd.f32 0.0, %v529
    %531 = vdwg.mxu0
    %v532 = vmul.f32 %v527, %v84
    %v533 = vmul.f32 %v530, %v84
    %v534 = vadd.f32 %v448, %v532
    %v535 = vadd.f32 %v449, %v533
    %v536 = vld [vmem:[%s5] sm:$0xff]
    %v537 = vld [vmem:[%s5 + $0x8] sm:$0xff]
    %v538 = vld [vmem:[%s5 + $0x10] sm:$0xff]
    %v539 = vld [vmem:[%s5 + $0x18] sm:$0xff]
    %v541 = vsel %vm86, %v534, 0
    %v544 = vsel %vm86, %v535, 0
    %546 = vmatpush.msra.mxu0 0.0
    %547 = vmatpush.msra.mxu0 0.0
    %548 = vmatpush.msra.mxu0 0.0
    %549 = vmatpush.msra.mxu0 0.0
    %550 = vmatpush.msra.mxu0 0.0
    %551 = vmatpush.msra.mxu0 0.0
    %552 = vmatpush.msra.mxu0 0.0
    %553 = vmatpush.msra.mxu0 0.0
    %554 = vmatpush.msra.mxu0 0.0
    %555 = vmatpush.msra.mxu0 0.0
    %556 = vmatpush.msra.mxu0 0.0
    %557 = vmatpush.msra.mxu0 0.0
    %558 = vmatpush.msra.mxu0 %v539
    %559 = vmatpush.msra.mxu0 %v538
    %560 = vmatpush.msra.mxu0 %v537
    %561 = vmatpush.msra.mxu0 %v536
    %562 = vmatmul.f32.gmra.mxu0 %v541
    %v563 = vpop.f32.mrf.mxu0
    %v564 = vadd.f32 0.0, %v563
    %565 = vmatmul.f32.gmra.mxu0 %v544
    %v566 = vpop.f32.mrf.mxu0
    %v567 = vadd.f32 0.0, %v566
    %568 = vdwg.mxu0
    %v569 = vadd.f32 %v59, %v564
    %v570 = vadd.f32 %v60, %v567
    %v571 = vperm.slane %v85, 3
    %v572 = vadd.f32 %v569, %v571
    %v573 = vadd.f32 %v570, %v571
    %v574 = vsel %vm86, %v572, 0.0
    %575 = vadd.xlane.f32.xlu0 %v574
    %v576 = vpop.xlane.xlu0 %575
    %v577 = vsel %vm86, %v573, 0.0
    %578 = vadd.xlane.f32.xlu0 %v577
    %v579 = vpop.xlane.xlu0 %578
    %v580 = vmul.f32 %v576, 0.03125
    %v581 = vmul.f32 %v579, 0.03125
    %v582 = vmul.f32 %v572, %v572
    %v583 = vmul.f32 %v573, %v573
    %v584 = vsel %vm86, %v582, 0.0
    %585 = vadd.xlane.f32.xlu0 %v584
    %v586 = vpop.xlane.xlu0 %585
    %v587 = vsel %vm86, %v583, 0.0
    %588 = vadd.xlane.f32.xlu0 %v587
    %v589 = vpop.xlane.xlu0 %588
    %v590 = vmul.f32 %v586, 0.03125
    %v591 = vmul.f32 %v589, 0.03125
    %v592 = vmul.f32 %v580, %v580
    %v593 = vmul.f32 %v581, %v581
    %v594 = vsub.f32 %v590, %v592
    %v595 = vsub.f32 %v591, %v593
    %v596 = vsub.f32 %v572, %v580
    %v597 = vsub.f32 %v573, %v581
    %v598 = vadd.f32 %v594, 1e-05
    %v599 = vadd.f32 %v595, 1e-05
    %v600 = vrsqrt.pop %v598
    %v601 = vmul.f32 %v600, %v598
    %v602 = vmul.f32 %v601, %v600
    %v603 = vmul.f32 0.5, %v602
    %v604 = vsub.f32 1.5, %v603
    %v605 = vmul.f32 %v600, %v604
    %vm606 = vweird.f32 %v598
    %vm607 = vweird.f32 %v600
    %vm608 = vmor %vm606, %vm607
    %v609 = vsel %vm608, %v600, %v605
    %v610 = vrsqrt.pop %v599
    %v611 = vmul.f32 %v610, %v599
    %v612 = vmul.f32 %v611, %v610
    %v613 = vmul.f32 0.5, %v612
    %v614 = vsub.f32 1.5, %v613
    %v615 = vmul.f32 %v610, %v614
    %vm616 = vweird.f32 %v599
    %vm617 = vweird.f32 %v610
    %vm618 = vmor %vm616, %vm617
    %v619 = vsel %vm618, %v610, %v615
    %v620 = vmul.f32 %v596, %v609
    %v621 = vmul.f32 %v597, %v619
    %v622 = vperm.slane %v85, 4
    %v623 = vmul.f32 %v620, %v622
    %v624 = vmul.f32 %v621, %v622
    %v625 = vperm.slane %v85, 5
    %v626 = vadd.f32 %v623, %v625
    %v627 = vadd.f32 %v624, %v625
    %v628 = vld [vmem:[%s6] sm:$0xff]
    %v629 = vld [vmem:[%s6 + $0x8] sm:$0xff]
    %v630 = vld [vmem:[%s6 + $0x10] sm:$0xff]
    %v631 = vld [vmem:[%s6 + $0x18] sm:$0xff]
    %v632 = vperm.slane %v85, 6
    %v634 = vsel %vm86, %v626, 0
    %v637 = vsel %vm86, %v627, 0
    %639 = vmatpush.msra.mxu0 0.0
    %640 = vmatpush.msra.mxu0 0.0
    %641 = vmatpush.msra.mxu0 0.0
    %642 = vmatpush.msra.mxu0 0.0
    %643 = vmatpush.msra.mxu0 0.0
    %644 = vmatpush.msra.mxu0 0.0
    %645 = vmatpush.msra.mxu0 0.0
    %646 = vmatpush.msra.mxu0 0.0
    %647 = vmatpush.msra.mxu0 0.0
    %648 = vmatpush.msra.mxu0 0.0
    %649 = vmatpush.msra.mxu0 0.0
    %650 = vmatpush.msra.mxu0 0.0
    %651 = vmatpush.msra.mxu0 %v631
    %652 = vmatpush.msra.mxu0 %v630
    %653 = vmatpush.msra.mxu0 %v629
    %654 = vmatpush.msra.mxu0 %v628
    %655 = vmatmul.f32.gmra.mxu0 %v634
    %v656 = vpop.f32.mrf.mxu0
    %v657 = vadd.f32 %v632, %v656
    %658 = vmatmul.f32.gmra.mxu0 %v637
    %v659 = vpop.f32.mrf.mxu0
    %v660 = vadd.f32 %v632, %v659
    %661 = vdwg.mxu0
    %v662 = vmul.f32 %v657, 1.702
    %v663 = vmul.f32 %v660, 1.702
    %v664 = vxor.u32 %v662, 2147483648
    %v665 = vxor.u32 %v663, 2147483648
    %v666 = vmul.f32 %v664, 1.442695
    %v667 = vpow.pop %v666
    %v668 = vmul.f32 %v665, 1.442695
    %v669 = vpow.pop %v668
    %v670 = vadd.f32 %v667, 1.0
    %v671 = vadd.f32 %v669, 1.0
    %v672 = vrcp.pop %v670
    %v673 = vmul.f32 %v670, %v672
    %v674 = vsub.f32 1.0, %v673
    %v675 = vmul.f32 %v672, %v674
    %v676 = vadd.f32 %v672, %v675
    %vm677 = vweird.f32 %v670
    %vm678 = vweird.f32 %v672
    %vm679 = vmor %vm677, %vm678
    %v680 = vsel %vm679, %v672, %v676
    %v681 = vand.u32 2147483647, %v670
    %vm682 = vcmp.eq.f32.partialorder %v681, 8.507059e+37
    %v683 = vand.u32 %v670, 2147483648
    %v684 = vor.u32 1.1754944e-38, %v683
    %v685 = vsel %vm682, %v684, %v680
    %v686 = vmul.f32 1.0, %v685
    %v687 = vrcp.pop %v671
    %v688 = vmul.f32 %v671, %v687
    %v689 = vsub.f32 1.0, %v688
    %v690 = vmul.f32 %v687, %v689
    %v691 = vadd.f32 %v687, %v690
    %vm692 = vweird.f32 %v671
    %vm693 = vweird.f32 %v687
    %vm694 = vmor %vm692, %vm693
    %v695 = vsel %vm694, %v687, %v691
    %v696 = vand.u32 2147483647, %v671
    %vm697 = vcmp.eq.f32.partialorder %v696, 8.507059e+37
    %v698 = vand.u32 %v671, 2147483648
    %v699 = vor.u32 1.1754944e-38, %v698
    %v700 = vsel %vm697, %v699, %v695
    %v701 = vmul.f32 1.0, %v700
    %v702 = vmul.f32 %v657, %v686
    %v703 = vmul.f32 %v660, %v701
    %v704 = vld [vmem:[%s7] sm:$0xff]
    %v705 = vld [vmem:[%s7 + $0x8] sm:$0xff]
    %v706 = vld [vmem:[%s7 + $0x10] sm:$0xff]
    %v707 = vld [vmem:[%s7 + $0x18] sm:$0xff]
    %v708 = vld [vmem:[%s7 + $0x20] sm:$0xff]
    %v709 = vld [vmem:[%s7 + $0x28] sm:$0xff]
    %v710 = vld [vmem:[%s7 + $0x30] sm:$0xff]
    %v711 = vld [vmem:[%s7 + $0x38] sm:$0xff]
    %v712 = vld [vmem:[%s7 + $0x40] sm:$0xff]
    %v713 = vld [vmem:[%s7 + $0x48] sm:$0xff]
    %v714 = vld [vmem:[%s7 + $0x50] sm:$0xff]
    %v715 = vld [vmem:[%s7 + $0x58] sm:$0xff]
    %v716 = vld [vmem:[%s7 + $0x60] sm:$0xff]
    %v717 = vld [vmem:[%s7 + $0x68] sm:$0xff]
    %v718 = vld [vmem:[%s7 + $0x70] sm:$0xff]
    %v719 = vld [vmem:[%s7 + $0x78] sm:$0xff]
    %720 = vmatpush.msra.mxu0 %v719
    %721 = vmatpush.msra.mxu0 %v718
    %722 = vmatpush.msra.mxu0 %v717
    %723 = vmatpush.msra.mxu0 %v716
    %724 = vmatpush.msra.mxu0 %v715
    %725 = vmatpush.msra.mxu0 %v714
    %726 = vmatpush.msra.mxu0 %v713
    %727 = vmatpush.msra.mxu0 %v712
    %728 = vmatpush.msra.mxu0 %v711
    %729 = vmatpush.msra.mxu0 %v710
    %730 = vmatpush.msra.mxu0 %v709
    %731 = vmatpush.msra.mxu0 %v708
    %732 = vmatpush.msra.mxu0 %v707
    %733 = vmatpush.msra.mxu0 %v706
    %734 = vmatpush.msra.mxu0 %v705
    %735 = vmatpush.msra.mxu0 %v704
    %736 = vmatmul.f32.gmra.mxu0 %v702
    %v737 = vpop.f32.mrf.mxu0
    %v738 = vadd.f32 0.0, %v737
    %739 = vmatmul.f32.gmra.mxu0 %v703
    %v740 = vpop.f32.mrf.mxu0
    %v741 = vadd.f32 0.0, %v740
    %742 = vdwg.mxu0
    %v743 = vadd.f32 %v572, %v738
    %v744 = vadd.f32 %v573, %v741
    %v745 = vperm.slane %v85, 7
    %v746 = vadd.f32 %v743, %v745
    %v747 = vadd.f32 %v744, %v745
    %s748 = scalar_lea.vmem %s8, 8
    %v749 = vld [vmem:[%s748] sm:$0xff]
    %v750 = vsel %vm86, %v746, 0.0
    %751 = vadd.xlane.f32.xlu0 %v750
    %v752 = vpop.xlane.xlu0 %751
    %v753 = vsel %vm86, %v747, 0.0
    %754 = vadd.xlane.f32.xlu0 %v753
    %v755 = vpop.xlane.xlu0 %754
    %v756 = vmul.f32 %v752, 0.03125
    %v757 = vmul.f32 %v755, 0.03125
    %v758 = vmul.f32 %v746, %v746
    %v759 = vmul.f32 %v747, %v747
    %v760 = vsel %vm86, %v758, 0.0
    %761 = vadd.xlane.f32.xlu0 %v760
    %v762 = vpop.xlane.xlu0 %761
    %v763 = vsel %vm86, %v759, 0.0
    %764 = vadd.xlane.f32.xlu0 %v763
    %v765 = vpop.xlane.xlu0 %764
    %v766 = vmul.f32 %v762, 0.03125
    %v767 = vmul.f32 %v765, 0.03125
    %v768 = vmul.f32 %v756, %v756
    %v769 = vmul.f32 %v757, %v757
    %v770 = vsub.f32 %v766, %v768
    %v771 = vsub.f32 %v767, %v769
    %v772 = vsub.f32 %v746, %v756
    %v773 = vsub.f32 %v747, %v757
    %v774 = vadd.f32 %v770, 1e-05
    %v775 = vadd.f32 %v771, 1e-05
    %v776 = vrsqrt.pop %v774
    %v777 = vmul.f32 %v776, %v774
    %v778 = vmul.f32 %v777, %v776
    %v779 = vmul.f32 0.5, %v778
    %v780 = vsub.f32 1.5, %v779
    %v781 = vmul.f32 %v776, %v780
    %vm782 = vweird.f32 %v774
    %vm783 = vweird.f32 %v776
    %vm784 = vmor %vm782, %vm783
    %v785 = vsel %vm784, %v776, %v781
    %v786 = vrsqrt.pop %v775
    %v787 = vmul.f32 %v786, %v775
    %v788 = vmul.f32 %v787, %v786
    %v789 = vmul.f32 0.5, %v788
    %v790 = vsub.f32 1.5, %v789
    %v791 = vmul.f32 %v786, %v790
    %vm792 = vweird.f32 %v775
    %vm793 = vweird.f32 %v786
    %vm794 = vmor %vm792, %vm793
    %v795 = vsel %vm794, %v786, %v791
    %v796 = vmul.f32 %v772, %v785
    %v797 = vmul.f32 %v773, %v795
    %v798 = vperm.slane %v749, 0
    %v799 = vmul.f32 %v796, %v798
    %v800 = vmul.f32 %v797, %v798
    %v801 = vperm.slane %v749, 1
    %v802 = vadd.f32 %v799, %v801
    %v803 = vadd.f32 %v800, %v801
    %s804 = scalar_lea.vmem %s4, 32
    %v805 = vld [vmem:[%s804] sm:$0xff]
    %v806 = vld [vmem:[%s804 + $0x8] sm:$0xff]
    %v807 = vld [vmem:[%s804 + $0x10] sm:$0xff]
    %v808 = vld [vmem:[%s804 + $0x18] sm:$0xff]
    %v809 = vperm.slane %v749, 2
    %v811 = vsel %vm86, %v802, 0
    %v814 = vsel %vm86, %v803, 0
    %816 = vmatpush.msra.mxu0 0.0
    %817 = vmatpush.msra.mxu0 0.0
    %818 = vmatpush.msra.mxu0 0.0
    %819 = vmatpush.msra.mxu0 0.0
    %820 = vmatpush.msra.mxu0 0.0
    %821 = vmatpush.msra.mxu0 0.0
    %822 = vmatpush.msra.mxu0 0.0
    %823 = vmatpush.msra.mxu0 0.0
    %824 = vmatpush.msra.mxu0 0.0
    %825 = vmatpush.msra.mxu0 0.0
    %826 = vmatpush.msra.mxu0 0.0
    %827 = vmatpush.msra.mxu0 0.0
    %828 = vmatpush.msra.mxu0 %v808
    %829 = vmatpush.msra.mxu0 %v807
    %830 = vmatpush.msra.mxu0 %v806
    %831 = vmatpush.msra.mxu0 %v805
    %832 = vmatmul.f32.gmra.mxu0 %v811
    %v833 = vpop.f32.mrf.mxu0
    %v834 = vadd.f32 %v809, %v833
    %835 = vmatmul.f32.gmra.mxu0 %v814
    %v836 = vpop.f32.mrf.mxu0
    %v837 = vadd.f32 %v809, %v836
    %838 = vdwg.mxu0
    %v839 = vmul.f32 %v834, %v69
    %v840 = vmul.f32 %v837, %v69
    %843 = vrot.lane.b32.xlu0 %v834, 96
    %v844 = vpop.permute.xlu0 %843
    %845 = vrot.lane.b32.xlu0 %v837, 96
    %v846 = vpop.permute.xlu0 %845
    %v848 = vsel %vm86, %v839, 0
    %v851 = vsel %vm86, %v840, 0
    %v853 = vsel %vm86, %v844, 0
    %v855 = vsel %vm86, %v846, 0
    %857 = vmatpush.xpose.msra.mxu0 0.0
    %858 = vmatpush.xpose.msra.mxu0 0.0
    %859 = vmatpush.xpose.msra.mxu0 0.0
    %860 = vmatpush.xpose.msra.mxu0 0.0
    %861 = vmatpush.xpose.msra.mxu0 0.0
    %862 = vmatpush.xpose.msra.mxu0 0.0
    %863 = vmatpush.xpose.msra.mxu0 0.0
    %864 = vmatpush.xpose.msra.mxu0 0.0
    %865 = vmatpush.xpose.msra.mxu0 0.0
    %866 = vmatpush.xpose.msra.mxu0 0.0
    %867 = vmatpush.xpose.msra.mxu0 0.0
    %868 = vmatpush.xpose.msra.mxu0 0.0
    %869 = vmatpush.xpose.msra.mxu0 0.0
    %870 = vmatpush.xpose.msra.mxu0 0.0
    %871 = vmatpush.xpose.msra.mxu0 %v855
    %872 = vmatpush.xpose.msra.mxu0 %v853
    %873 = vmatmul.f32.gmra.mxu0 %v848
    %v874 = vpop.f32.mrf.mxu0
    %v875 = vadd.f32 %v61, %v874
    %876 = vmatmul.f32.gmra.mxu0 %v851
    %v877 = vpop.f32.mrf.mxu0
    %v878 = vadd.f32 %v62, %v877
    %879 = vdwg.mxu0
    %v880 = vsel %vm216, %v875, -inf
    %881 = vmax.xlane.f32.xlu0 %v880
    %v882 = vpop.xlane.xlu0 %881
    %v883 = vsel %vm216, %v878, -inf
    %884 = vmax.xlane.f32.xlu0 %v883
    %v885 = vpop.xlane.xlu0 %884
    %v886 = vsub.f32 %v875, %v882
    %v887 = vsub.f32 %v878, %v885
    %v888 = vmul.f32 %v886, 1.442695
    %v889 = vpow.pop %v888
    %v890 = vmul.f32 %v887, 1.442695
    %v891 = vpow.pop %v890
    %v892 = vsel %vm216, %v889, 0.0
    %893 = vadd.xlane.f32.xlu0 %v892
    %v894 = vpop.xlane.xlu0 %893
    %v895 = vsel %vm216, %v891, 0.0
    %896 = vadd.xlane.f32.xlu0 %v895
    %v897 = vpop.xlane.xlu0 %896
    %v898 = vrcp.pop %v894
    %v899 = vrcp.pop %v897
    %v900 = vmul.f32 %v889, %v898
    %v901 = vmul.f32 %v891, %v899
    %902 = vrot.lane.b32.xlu0 %v834, 64
    %v903 = vpop.permute.xlu0 %902
    %904 = vrot.lane.b32.xlu0 %v837, 64
    %v905 = vpop.permute.xlu0 %904
    %v909 = vsel %vm216, %v900, 0
    %v912 = vsel %vm216, %v901, 0
    %914 = vmatpush.msra.mxu0 0.0
    %915 = vmatpush.msra.mxu0 0.0
    %916 = vmatpush.msra.mxu0 0.0
    %917 = vmatpush.msra.mxu0 0.0
    %918 = vmatpush.msra.mxu0 0.0
    %919 = vmatpush.msra.mxu0 0.0
    %920 = vmatpush.msra.mxu0 0.0
    %921 = vmatpush.msra.mxu0 0.0
    %922 = vmatpush.msra.mxu0 0.0
    %923 = vmatpush.msra.mxu0 0.0
    %924 = vmatpush.msra.mxu0 0.0
    %925 = vmatpush.msra.mxu0 0.0
    %926 = vmatpush.msra.mxu0 0.0
    %927 = vmatpush.msra.mxu0 0.0
    %928 = vmatpush.msra.mxu0 %v905
    %929 = vmatpush.msra.mxu0 %v903
    %930 = vmatmul.f32.gmra.mxu0 %v909
    %v931 = vpop.f32.mrf.mxu0
    %v932 = vadd.f32 0.0, %v931
    %933 = vmatmul.f32.gmra.mxu0 %v912
    %v934 = vpop.f32.mrf.mxu0
    %v935 = vadd.f32 0.0, %v934
    %936 = vdwg.mxu0
    %v937 = vmul.f32 %v932, %v69
    %v938 = vmul.f32 %v935, %v69
    %v939 = vadd.f32 %v937, 0.0
    %v940 = vadd.f32 %v938, 0.0
    %v941 = vmul.f32 %v834, %v74
    %v942 = vmul.f32 %v837, %v74
    %v944 = vsel %vm86, %v941, 0
    %v947 = vsel %vm86, %v942, 0
    %949 = vmatpush.xpose.msra.mxu0 0.0
    %950 = vmatpush.xpose.msra.mxu0 0.0
    %951 = vmatpush.xpose.msra.mxu0 0.0
    %952 = vmatpush.xpose.msra.mxu0 0.0
    %953 = vmatpush.xpose.msra.mxu0 0.0
    %954 = vmatpush.xpose.msra.mxu0 0.0
    %955 = vmatpush.xpose.msra.mxu0 0.0
    %956 = vmatpush.xpose.msra.mxu0 0.0
    %957 = vmatpush.xpose.msra.mxu0 0.0
    %958 = vmatpush.xpose.msra.mxu0 0.0
    %959 = vmatpush.xpose.msra.mxu0 0.0
    %960 = vmatpush.xpose.msra.mxu0 0.0
    %961 = vmatpush.xpose.msra.mxu0 0.0
    %962 = vmatpush.xpose.msra.mxu0 0.0
    %963 = vmatpush.xpose.msra.mxu0 %v855
    %964 = vmatpush.xpose.msra.mxu0 %v853
    %965 = vmatmul.f32.gmra.mxu0 %v944
    %v966 = vpop.f32.mrf.mxu0
    %v967 = vadd.f32 %v61, %v966
    %968 = vmatmul.f32.gmra.mxu0 %v947
    %v969 = vpop.f32.mrf.mxu0
    %v970 = vadd.f32 %v62, %v969
    %971 = vdwg.mxu0
    %v972 = vsel %vm216, %v967, -inf
    %973 = vmax.xlane.f32.xlu0 %v972
    %v974 = vpop.xlane.xlu0 %973
    %v975 = vsel %vm216, %v970, -inf
    %976 = vmax.xlane.f32.xlu0 %v975
    %v977 = vpop.xlane.xlu0 %976
    %v978 = vsub.f32 %v967, %v974
    %v979 = vsub.f32 %v970, %v977
    %v980 = vmul.f32 %v978, 1.442695
    %v981 = vpow.pop %v980
    %v982 = vmul.f32 %v979, 1.442695
    %v983 = vpow.pop %v982
    %v984 = vsel %vm216, %v981, 0.0
    %985 = vadd.xlane.f32.xlu0 %v984
    %v986 = vpop.xlane.xlu0 %985
    %v987 = vsel %vm216, %v983, 0.0
    %988 = vadd.xlane.f32.xlu0 %v987
    %v989 = vpop.xlane.xlu0 %988
    %v990 = vrcp.pop %v986
    %v991 = vrcp.pop %v989
    %v992 = vmul.f32 %v981, %v990
    %v993 = vmul.f32 %v983, %v991
    %v995 = vsel %vm216, %v992, 0
    %v998 = vsel %vm216, %v993, 0
    %1000 = vmatpush.msra.mxu0 0.0
    %1001 = vmatpush.msra.mxu0 0.0
    %1002 = vmatpush.msra.mxu0 0.0
    %1003 = vmatpush.msra.mxu0 0.0
    %1004 = vmatpush.msra.mxu0 0.0
    %1005 = vmatpush.msra.mxu0 0.0
    %1006 = vmatpush.msra.mxu0 0.0
    %1007 = vmatpush.msra.mxu0 0.0
    %1008 = vmatpush.msra.mxu0 0.0
    %1009 = vmatpush.msra.mxu0 0.0
    %1010 = vmatpush.msra.mxu0 0.0
    %1011 = vmatpush.msra.mxu0 0.0
    %1012 = vmatpush.msra.mxu0 0.0
    %1013 = vmatpush.msra.mxu0 0.0
    %1014 = vmatpush.msra.mxu0 %v905
    %1015 = vmatpush.msra.mxu0 %v903
    %1016 = vmatmul.f32.gmra.mxu0 %v995
    %v1017 = vpop.f32.mrf.mxu0
    %v1018 = vadd.f32 0.0, %v1017
    %1019 = vmatmul.f32.gmra.mxu0 %v998
    %v1020 = vpop.f32.mrf.mxu0
    %v1021 = vadd.f32 0.0, %v1020
    %1022 = vdwg.mxu0
    %v1023 = vmul.f32 %v1018, %v74
    %v1024 = vmul.f32 %v1021, %v74
    %v1025 = vadd.f32 %v939, %v1023
    %v1026 = vadd.f32 %v940, %v1024
    %v1027 = vmul.f32 %v834, %v79
    %v1028 = vmul.f32 %v837, %v79
    %v1030 = vsel %vm86, %v1027, 0
    %v1033 = vsel %vm86, %v1028, 0
    %1035 = vmatpush.xpose.msra.mxu0 0.0
    %1036 = vmatpush.xpose.msra.mxu0 0.0
    %1037 = vmatpush.xpose.msra.mxu0 0.0
    %1038 = vmatpush.xpose.msra.mxu0 0.0
    %1039 = vmatpush.xpose.msra.mxu0 0.0
    %1040 = vmatpush.xpose.msra.mxu0 0.0
    %1041 = vmatpush.xpose.msra.mxu0 0.0
    %1042 = vmatpush.xpose.msra.mxu0 0.0
    %1043 = vmatpush.xpose.msra.mxu0 0.0
    %1044 = vmatpush.xpose.msra.mxu0 0.0
    %1045 = vmatpush.xpose.msra.mxu0 0.0
    %1046 = vmatpush.xpose.msra.mxu0 0.0
    %1047 = vmatpush.xpose.msra.mxu0 0.0
    %1048 = vmatpush.xpose.msra.mxu0 0.0
    %1049 = vmatpush.xpose.msra.mxu0 %v855
    %1050 = vmatpush.xpose.msra.mxu0 %v853
    %1051 = vmatmul.f32.gmra.mxu0 %v1030
    %v1052 = vpop.f32.mrf.mxu0
    %v1053 = vadd.f32 %v61, %v1052
    %1054 = vmatmul.f32.gmra.mxu0 %v1033
    %v1055 = vpop.f32.mrf.mxu0
    %v1056 = vadd.f32 %v62, %v1055
    %1057 = vdwg.mxu0
    %v1058 = vsel %vm216, %v1053, -inf
    %1059 = vmax.xlane.f32.xlu0 %v1058
    %v1060 = vpop.xlane.xlu0 %1059
    %v1061 = vsel %vm216, %v1056, -inf
    %1062 = vmax.xlane.f32.xlu0 %v1061
    %v1063 = vpop.xlane.xlu0 %1062
    %v1064 = vsub.f32 %v1053, %v1060
    %v1065 = vsub.f32 %v1056, %v1063
    %v1066 = vmul.f32 %v1064, 1.442695
    %v1067 = vpow.pop %v1066
    %v1068 = vmul.f32 %v1065, 1.442695
    %v1069 = vpow.pop %v1068
    %v1070 = vsel %vm216, %v1067, 0.0
    %1071 = vadd.xlane.f32.xlu0 %v1070
    %v1072 = vpop.xlane.xlu0 %1071
    %v1073 = vsel %vm216, %v1069, 0.0
    %1074 = vadd.xlane.f32.xlu0 %v1073
    %v1075 = vpop.xlane.xlu0 %1074
    %v1076 = vrcp.pop %v1072
    %v1077 = vrcp.pop %v1075
    %v1078 = vmul.f32 %v1067, %v1076
    %v1079 = vmul.f32 %v1069, %v1077
    %v1081 = vsel %vm216, %v1078, 0
    %v1084 = vsel %vm216, %v1079, 0
    %1086 = vmatpush.msra.mxu0 0.0
    %1087 = vmatpush.msra.mxu0 0.0
    %1088 = vmatpush.msra.mxu0 0.0
    %1089 = vmatpush.msra.mxu0 0.0
    %1090 = vmatpush.msra.mxu0 0.0
    %1091 = vmatpush.msra.mxu0 0.0
    %1092 = vmatpush.msra.mxu0 0.0
    %1093 = vmatpush.msra.mxu0 0.0
    %1094 = vmatpush.msra.mxu0 0.0
    %1095 = vmatpush.msra.mxu0 0.0
    %1096 = vmatpush.msra.mxu0 0.0
    %1097 = vmatpush.msra.mxu0 0.0
    %1098 = vmatpush.msra.mxu0 0.0
    %1099 = vmatpush.msra.mxu0 0.0
    %1100 = vmatpush.msra.mxu0 %v905
    %1101 = vmatpush.msra.mxu0 %v903
    %1102 = vmatmul.f32.gmra.mxu0 %v1081
    %v1103 = vpop.f32.mrf.mxu0
    %v1104 = vadd.f32 0.0, %v1103
    %1105 = vmatmul.f32.gmra.mxu0 %v1084
    %v1106 = vpop.f32.mrf.mxu0
    %v1107 = vadd.f32 0.0, %v1106
    %1108 = vdwg.mxu0
    %v1109 = vmul.f32 %v1104, %v79
    %v1110 = vmul.f32 %v1107, %v79
    %v1111 = vadd.f32 %v1025, %v1109
    %v1112 = vadd.f32 %v1026, %v1110
    %v1113 = vmul.f32 %v834, %v84
    %v1114 = vmul.f32 %v837, %v84
    %v1116 = vsel %vm86, %v1113, 0
    %v1119 = vsel %vm86, %v1114, 0
    %1121 = vmatpush.xpose.msra.mxu0 0.0
    %1122 = vmatpush.xpose.msra.mxu0 0.0
    %1123 = vmatpush.xpose.msra.mxu0 0.0
    %1124 = vmatpush.xpose.msra.mxu0 0.0
    %1125 = vmatpush.xpose.msra.mxu0 0.0
    %1126 = vmatpush.xpose.msra.mxu0 0.0
    %1127 = vmatpush.xpose.msra.mxu0 0.0
    %1128 = vmatpush.xpose.msra.mxu0 0.0
    %1129 = vmatpush.xpose.msra.mxu0 0.0
    %1130 = vmatpush.xpose.msra.mxu0 0.0
    %1131 = vmatpush.xpose.msra.mxu0 0.0
    %1132 = vmatpush.xpose.msra.mxu0 0.0
    %1133 = vmatpush.xpose.msra.mxu0 0.0
    %1134 = vmatpush.xpose.msra.mxu0 0.0
    %1135 = vmatpush.xpose.msra.mxu0 %v855
    %1136 = vmatpush.xpose.msra.mxu0 %v853
    %1137 = vmatmul.f32.gmra.mxu0 %v1116
    %v1138 = vpop.f32.mrf.mxu0
    %v1139 = vadd.f32 %v61, %v1138
    %1140 = vmatmul.f32.gmra.mxu0 %v1119
    %v1141 = vpop.f32.mrf.mxu0
    %v1142 = vadd.f32 %v62, %v1141
    %1143 = vdwg.mxu0
    %v1144 = vsel %vm216, %v1139, -inf
    %1145 = vmax.xlane.f32.xlu0 %v1144
    %v1146 = vpop.xlane.xlu0 %1145
    %v1147 = vsel %vm216, %v1142, -inf
    %1148 = vmax.xlane.f32.xlu0 %v1147
    %v1149 = vpop.xlane.xlu0 %1148
    %v1150 = vsub.f32 %v1139, %v1146
    %v1151 = vsub.f32 %v1142, %v1149
    %v1152 = vmul.f32 %v1150, 1.442695
    %v1153 = vpow.pop %v1152
    %v1154 = vmul.f32 %v1151, 1.442695
    %v1155 = vpow.pop %v1154
    %v1156 = vsel %vm216, %v1153, 0.0
    %1157 = vadd.xlane.f32.xlu0 %v1156
    %v1158 = vpop.xlane.xlu0 %1157
    %v1159 = vsel %vm216, %v1155, 0.0
    %1160 = vadd.xlane.f32.xlu0 %v1159
    %v1161 = vpop.xlane.xlu0 %1160
    %v1162 = vrcp.pop %v1158
    %v1163 = vrcp.pop %v1161
    %v1164 = vmul.f32 %v1153, %v1162
    %v1165 = vmul.f32 %v1155, %v1163
    %v1167 = vsel %vm216, %v1164, 0
    %v1170 = vsel %vm216, %v1165, 0
    %1172 = vmatpush.msra.mxu0 0.0
    %1173 = vmatpush.msra.mxu0 0.0
    %1174 = vmatpush.msra.mxu0 0.0
    %1175 = vmatpush.msra.mxu0 0.0
    %1176 = vmatpush.msra.mxu0 0.0
    %1177 = vmatpush.msra.mxu0 0.0
    %1178 = vmatpush.msra.mxu0 0.0
    %1179 = vmatpush.msra.mxu0 0.0
    %1180 = vmatpush.msra.mxu0 0.0
    %1181 = vmatpush.msra.mxu0 0.0
    %1182 = vmatpush.msra.mxu0 0.0
    %1183 = vmatpush.msra.mxu0 0.0
    %1184 = vmatpush.msra.mxu0 0.0
    %1185 = vmatpush.msra.mxu0 0.0
    %1186 = vmatpush.msra.mxu0 %v905
    %1187 = vmatpush.msra.mxu0 %v903
    %1188 = vmatmul.f32.gmra.mxu0 %v1167
    %v1189 = vpop.f32.mrf.mxu0
    %v1190 = vadd.f32 0.0, %v1189
    %1191 = vmatmul.f32.gmra.mxu0 %v1170
    %v1192 = vpop.f32.mrf.mxu0
    %v1193 = vadd.f32 0.0, %v1192
    %1194 = vdwg.mxu0
    %v1195 = vmul.f32 %v1190, %v84
    %v1196 = vmul.f32 %v1193, %v84
    %v1197 = vadd.f32 %v1111, %v1195
    %v1198 = vadd.f32 %v1112, %v1196
    %s1199 = scalar_lea.vmem %s5, 32
    %v1200 = vld [vmem:[%s1199] sm:$0xff]
    %v1201 = vld [vmem:[%s1199 + $0x8] sm:$0xff]
    %v1202 = vld [vmem:[%s1199 + $0x10] sm:$0xff]
    %v1203 = vld [vmem:[%s1199 + $0x18] sm:$0xff]
    %v1205 = vsel %vm86, %v1197, 0
    %v1208 = vsel %vm86, %v1198, 0
    %1210 = vmatpush.msra.mxu0 0.0
    %1211 = vmatpush.msra.mxu0 0.0
    %1212 = vmatpush.msra.mxu0 0.0
    %1213 = vmatpush.msra.mxu0 0.0
    %1214 = vmatpush.msra.mxu0 0.0
    %1215 = vmatpush.msra.mxu0 0.0
    %1216 = vmatpush.msra.mxu0 0.0
    %1217 = vmatpush.msra.mxu0 0.0
    %1218 = vmatpush.msra.mxu0 0.0
    %1219 = vmatpush.msra.mxu0 0.0
    %1220 = vmatpush.msra.mxu0 0.0
    %1221 = vmatpush.msra.mxu0 0.0
    %1222 = vmatpush.msra.mxu0 %v1203
    %1223 = vmatpush.msra.mxu0 %v1202
    %1224 = vmatpush.msra.mxu0 %v1201
    %1225 = vmatpush.msra.mxu0 %v1200
    %1226 = vmatmul.f32.gmra.mxu0 %v1205
    %v1227 = vpop.f32.mrf.mxu0
    %v1228 = vadd.f32 0.0, %v1227
    %1229 = vmatmul.f32.gmra.mxu0 %v1208
    %v1230 = vpop.f32.mrf.mxu0
    %v1231 = vadd.f32 0.0, %v1230
    %1232 = vdwg.mxu0
    %v1233 = vadd.f32 %v746, %v1228
    %v1234 = vadd.f32 %v747, %v1231
    %v1235 = vperm.slane %v749, 3
    %v1236 = vadd.f32 %v1233, %v1235
    %v1237 = vadd.f32 %v1234, %v1235
    %v1238 = vsel %vm86, %v1236, 0.0
    %1239 = vadd.xlane.f32.xlu0 %v1238
    %v1240 = vpop.xlane.xlu0 %1239
    %v1241 = vsel %vm86, %v1237, 0.0
    %1242 = vadd.xlane.f32.xlu0 %v1241
    %v1243 = vpop.xlane.xlu0 %1242
    %v1244 = vmul.f32 %v1240, 0.03125
    %v1245 = vmul.f32 %v1243, 0.03125
    %v1246 = vmul.f32 %v1236, %v1236
    %v1247 = vmul.f32 %v1237, %v1237
    %v1248 = vsel %vm86, %v1246, 0.0
    %1249 = vadd.xlane.f32.xlu0 %v1248
    %v1250 = vpop.xlane.xlu0 %1249
    %v1251 = vsel %vm86, %v1247, 0.0
    %1252 = vadd.xlane.f32.xlu0 %v1251
    %v1253 = vpop.xlane.xlu0 %1252
    %v1254 = vmul.f32 %v1250, 0.03125
    %v1255 = vmul.f32 %v1253, 0.03125
    %v1256 = vmul.f32 %v1244, %v1244
    %v1257 = vmul.f32 %v1245, %v1245
    %v1258 = vsub.f32 %v1254, %v1256
    %v1259 = vsub.f32 %v1255, %v1257
    %v1260 = vsub.f32 %v1236, %v1244
    %v1261 = vsub.f32 %v1237, %v1245
    %v1262 = vadd.f32 %v1258, 1e-05
    %v1263 = vadd.f32 %v1259, 1e-05
    %v1264 = vrsqrt.pop %v1262
    %v1265 = vmul.f32 %v1264, %v1262
    %v1266 = vmul.f32 %v1265, %v1264
    %v1267 = vmul.f32 0.5, %v1266
    %v1268 = vsub.f32 1.5, %v1267
    %v1269 = vmul.f32 %v1264, %v1268
    %vm1270 = vweird.f32 %v1262
    %vm1271 = vweird.f32 %v1264
    %vm1272 = vmor %vm1270, %vm1271
    %v1273 = vsel %vm1272, %v1264, %v1269
    %v1274 = vrsqrt.pop %v1263
    %v1275 = vmul.f32 %v1274, %v1263
    %v1276 = vmul.f32 %v1275, %v1274
    %v1277 = vmul.f32 0.5, %v1276
    %v1278 = vsub.f32 1.5, %v1277
    %v1279 = vmul.f32 %v1274, %v1278
    %vm1280 = vweird.f32 %v1263
    %vm1281 = vweird.f32 %v1274
    %vm1282 = vmor %vm1280, %vm1281
    %v1283 = vsel %vm1282, %v1274, %v1279
    %v1284 = vmul.f32 %v1260, %v1273
    %v1285 = vmul.f32 %v1261, %v1283
    %v1286 = vperm.slane %v749, 4
    %v1287 = vmul.f32 %v1284, %v1286
    %v1288 = vmul.f32 %v1285, %v1286
    %v1289 = vperm.slane %v749, 5
    %v1290 = vadd.f32 %v1287, %v1289
    %v1291 = vadd.f32 %v1288, %v1289
    %s1292 = scalar_lea.vmem %s6, 32
    %v1293 = vld [vmem:[%s1292] sm:$0xff]
    %v1294 = vld [vmem:[%s1292 + $0x8] sm:$0xff]
    %v1295 = vld [vmem:[%s1292 + $0x10] sm:$0xff]
    %v1296 = vld [vmem:[%s1292 + $0x18] sm:$0xff]
    %v1297 = vperm.slane %v749, 6
    %v1299 = vsel %vm86, %v1290, 0
    %v1302 = vsel %vm86, %v1291, 0
    %1304 = vmatpush.msra.mxu0 0.0
    %1305 = vmatpush.msra.mxu0 0.0
    %1306 = vmatpush.msra.mxu0 0.0
    %1307 = vmatpush.msra.mxu0 0.0
    %1308 = vmatpush.msra.mxu0 0.0
    %1309 = vmatpush.msra.mxu0 0.0
    %1310 = vmatpush.msra.mxu0 0.0
    %1311 = vmatpush.msra.mxu0 0.0
    %1312 = vmatpush.msra.mxu0 0.0
    %1313 = vmatpush.msra.mxu0 0.0
    %1314 = vmatpush.msra.mxu0 0.0
    %1315 = vmatpush.msra.mxu0 0.0
    %1316 = vmatpush.msra.mxu0 %v1296
    %1317 = vmatpush.msra.mxu0 %v1295
    %1318 = vmatpush.msra.mxu0 %v1294
    %1319 = vmatpush.msra.mxu0 %v1293
    %1320 = vmatmul.f32.gmra.mxu0 %v1299
    %v1321 = vpop.f32.mrf.mxu0
    %v1322 = vadd.f32 %v1297, %v1321
    %1323 = vmatmul.f32.gmra.mxu0 %v1302
    %v1324 = vpop.f32.mrf.mxu0
    %v1325 = vadd.f32 %v1297, %v1324
    %1326 = vdwg.mxu0
    %v1327 = vmul.f32 %v1322, 1.702
    %v1328 = vmul.f32 %v1325, 1.702
    %v1329 = vxor.u32 %v1327, 2147483648
    %v1330 = vxor.u32 %v1328, 2147483648
    %v1331 = vmul.f32 %v1329, 1.442695
    %v1332 = vpow.pop %v1331
    %v1333 = vmul.f32 %v1330, 1.442695
    %v1334 = vpow.pop %v1333
    %v1335 = vadd.f32 %v1332, 1.0
    %v1336 = vadd.f32 %v1334, 1.0
    %v1337 = vrcp.pop %v1335
    %v1338 = vmul.f32 %v1335, %v1337
    %v1339 = vsub.f32 1.0, %v1338
    %v1340 = vmul.f32 %v1337, %v1339
    %v1341 = vadd.f32 %v1337, %v1340
    %vm1342 = vweird.f32 %v1335
    %vm1343 = vweird.f32 %v1337
    %vm1344 = vmor %vm1342, %vm1343
    %v1345 = vsel %vm1344, %v1337, %v1341
    %v1346 = vand.u32 2147483647, %v1335
    %vm1347 = vcmp.eq.f32.partialorder %v1346, 8.507059e+37
    %v1348 = vand.u32 %v1335, 2147483648
    %v1349 = vor.u32 1.1754944e-38, %v1348
    %v1350 = vsel %vm1347, %v1349, %v1345
    %v1351 = vmul.f32 1.0, %v1350
    %v1352 = vrcp.pop %v1336
    %v1353 = vmul.f32 %v1336, %v1352
    %v1354 = vsub.f32 1.0, %v1353
    %v1355 = vmul.f32 %v1352, %v1354
    %v1356 = vadd.f32 %v1352, %v1355
    %vm1357 = vweird.f32 %v1336
    %vm1358 = vweird.f32 %v1352
    %vm1359 = vmor %vm1357, %vm1358
    %v1360 = vsel %vm1359, %v1352, %v1356
    %v1361 = vand.u32 2147483647, %v1336
    %vm1362 = vcmp.eq.f32.partialorder %v1361, 8.507059e+37
    %v1363 = vand.u32 %v1336, 2147483648
    %v1364 = vor.u32 1.1754944e-38, %v1363
    %v1365 = vsel %vm1362, %v1364, %v1360
    %v1366 = vmul.f32 1.0, %v1365
    %v1367 = vmul.f32 %v1322, %v1351
    %v1368 = vmul.f32 %v1325, %v1366
    %s1369 = scalar_lea.vmem %s7, 128
    %v1370 = vld [vmem:[%s1369] sm:$0xff]
    %v1371 = vld [vmem:[%s1369 + $0x8] sm:$0xff]
    %v1372 = vld [vmem:[%s1369 + $0x10] sm:$0xff]
    %v1373 = vld [vmem:[%s1369 + $0x18] sm:$0xff]
    %v1374 = vld [vmem:[%s1369 + $0x20] sm:$0xff]
    %v1375 = vld [vmem:[%s1369 + $0x28] sm:$0xff]
    %v1376 = vld [vmem:[%s1369 + $0x30] sm:$0xff]
    %v1377 = vld [vmem:[%s1369 + $0x38] sm:$0xff]
    %v1378 = vld [vmem:[%s1369 + $0x40] sm:$0xff]
    %v1379 = vld [vmem:[%s1369 + $0x48] sm:$0xff]
    %v1380 = vld [vmem:[%s1369 + $0x50] sm:$0xff]
    %v1381 = vld [vmem:[%s1369 + $0x58] sm:$0xff]
    %v1382 = vld [vmem:[%s1369 + $0x60] sm:$0xff]
    %v1383 = vld [vmem:[%s1369 + $0x68] sm:$0xff]
    %v1384 = vld [vmem:[%s1369 + $0x70] sm:$0xff]
    %v1385 = vld [vmem:[%s1369 + $0x78] sm:$0xff]
    %1386 = vmatpush.msra.mxu0 %v1385
    %1387 = vmatpush.msra.mxu0 %v1384
    %1388 = vmatpush.msra.mxu0 %v1383
    %1389 = vmatpush.msra.mxu0 %v1382
    %1390 = vmatpush.msra.mxu0 %v1381
    %1391 = vmatpush.msra.mxu0 %v1380
    %1392 = vmatpush.msra.mxu0 %v1379
    %1393 = vmatpush.msra.mxu0 %v1378
    %1394 = vmatpush.msra.mxu0 %v1377
    %1395 = vmatpush.msra.mxu0 %v1376
    %1396 = vmatpush.msra.mxu0 %v1375
    %1397 = vmatpush.msra.mxu0 %v1374
    %1398 = vmatpush.msra.mxu0 %v1373
    %1399 = vmatpush.msra.mxu0 %v1372
    %1400 = vmatpush.msra.mxu0 %v1371
    %1401 = vmatpush.msra.mxu0 %v1370
    %1402 = vmatmul.f32.gmra.mxu0 %v1367
    %v1403 = vpop.f32.mrf.mxu0
    %v1404 = vadd.f32 0.0, %v1403
    %1405 = vmatmul.f32.gmra.mxu0 %v1368
    %v1406 = vpop.f32.mrf.mxu0
    %v1407 = vadd.f32 0.0, %v1406
    %1408 = vdwg.mxu0
    %v1409 = vadd.f32 %v1236, %v1404
    %v1410 = vadd.f32 %v1237, %v1407
    %v1411 = vperm.slane %v749, 7
    %v1412 = vadd.f32 %v1409, %v1411
    %v1413 = vadd.f32 %v1410, %v1411
    %1414 = vst.msk [vmem:[#allocation2] sm:$0xff] %vm86, %v1412
    %1415 = vst.msk [vmem:[#allocation2 + $0x8] sm:$0xff] %vm86, %v1413
    %s1416 = sld [smem:[#allocation3]]
    %s1417 = scalar_lea.vmem [#allocation2], %s1416
    %v1418 = vld [vmem:[%s1417] sm:$0x1]
    %s1419 = sld [smem:[#allocation3 + $0x1]]
    %s1420 = sadd.s32 %s1419, 8
    %s1421 = scalar_lea.vmem [#allocation2], %s1420
    %v1422 = vld [vmem:[%s1421] sm:$0x1]
    %v1424 = vrot.slane %v1422, 7
    %vm1426 = vcmask 1040384
    %v1427 = vsel %vm1426, %v1418, %v1424
    %v1428 = vld [vmem:[%s9] sm:$0x1]
    %v1429 = vld [vmem:[%s10] sm:$0x1]
    %vm1430 = vcmask 254976
    %v1431 = vsel %vm1430, %v1427, 0.0
    %1432 = vadd.xlane.f32.xlu0 %v1431
    %v1433 = vpop.xlane.xlu0 %1432
    %v1434 = vmul.f32 %v1433, 0.03125
    %v1435 = vmul.f32 %v1427, %v1427
    %v1436 = vsel %vm1430, %v1435, 0.0
    %1437 = vadd.xlane.f32.xlu0 %v1436
    %v1438 = vpop.xlane.xlu0 %1437
    %v1439 = vmul.f32 %v1438, 0.03125
    %v1440 = vmul.f32 %v1434, %v1434
    %v1441 = vsub.f32 %v1439, %v1440
    %v1442 = vsub.f32 %v1427, %v1434
    %v1443 = vadd.f32 %v1441, 1e-05
    %v1444 = vrsqrt.pop %v1443
    %v1445 = vmul.f32 %v1444, %v1443
    %v1446 = vmul.f32 %v1445, %v1444
    %v1447 = vmul.f32 0.5, %v1446
    %v1448 = vsub.f32 1.5, %v1447
    %v1449 = vmul.f32 %v1444, %v1448
    %vm1450 = vweird.f32 %v1443
    %vm1451 = vweird.f32 %v1444
    %vm1452 = vmor %vm1450, %vm1451
    %v1453 = vsel %vm1452, %v1444, %v1449
    %v1454 = vmul.f32 %v1442, %v1453
    %v1456 = vperm.slane %v1428, 0
    %v1458 = vmul.f32 %v1454, %v1456
    %v1460 = vperm.slane %v1429, 0
    %v1462 = vadd.f32 %v1458, %v1460
    %v1463 = vld [vmem:[%s11] sm:$0xff]
    %v1464 = vld [vmem:[%s11 + $0x8] sm:$0xff]
    %v1465 = vld [vmem:[%s11 + $0x10] sm:$0xff]
    %v1466 = vld [vmem:[%s11 + $0x18] sm:$0xff]
    %v1468 = vsel %vm86, %v1462, 0
    %1470 = vmatpush.msra.mxu0 0.0
    %1471 = vmatpush.msra.mxu0 0.0
    %1472 = vmatpush.msra.mxu0 0.0
    %1473 = vmatpush.msra.mxu0 0.0
    %1474 = vmatpush.msra.mxu0 0.0
    %1475 = vmatpush.msra.mxu0 0.0
    %1476 = vmatpush.msra.mxu0 0.0
    %1477 = vmatpush.msra.mxu0 0.0
    %1478 = vmatpush.msra.mxu0 0.0
    %1479 = vmatpush.msra.mxu0 0.0
    %1480 = vmatpush.msra.mxu0 0.0
    %1481 = vmatpush.msra.mxu0 0.0
    %1482 = vmatpush.msra.mxu0 %v1466
    %1483 = vmatpush.msra.mxu0 %v1465
    %1484 = vmatpush.msra.mxu0 %v1464
    %1485 = vmatpush.msra.mxu0 %v1463
    %1486 = vmatmul.f32.gmra.mxu0 %v1468
    %v1487 = vpop.f32.mrf.mxu0
    %v1488 = vadd.f32 0.0, %v1487
    %1489 = vdwg.mxu0
    %1490 = vst.msk [vmem:[#allocation6] sm:$0x3] %vm1430, %v1488
    // Predicated region
    $region54: #{text_encoder_forward.1} parent=1 // pred_check
      _
    $region55: #{text_encoder_forward.1} parent=1 // pred_check_branch
      %1492 = sbr.rel (0) target = $region57
    $region56: #{text_encoder_forward.1} parent=1 // pred_region
      %1494 = vsyncadd [#allocation4], 0
      %s1496 = sshll.u32 [#allocation6], 4
      %s1497 = int_to_ptr.vmem [resolvable:$true] %s1496
      %s1498 = sshll.u32 %s12, 4
      %s1499 = int_to_ptr.hbm [resolvable:$true] %s1498
      %1501 = dma.vmem_to_hbm [thread:$0]  %s1497, 32, %s1499, [#allocation4]
    $region57: #{text_encoder_forward.1} parent=1 // pred_fallthru
      _
    // Predicated region
    $region58: #{text_encoder_forward.1} parent=1 // pred_check
      _
    $region59: #{text_encoder_forward.1} parent=1 // pred_check_branch
      %1503 = sbr.rel (0) target = $region61
    $region60: #{text_encoder_forward.1} parent=1 // pred_region
      %1505 = dma.done [#allocation4], 32
    $region61: #{text_encoder_forward.1} parent=1 // pred_fallthru
      _
    %1506 = vsyncpa [#allocation4], 1
    %1507 = vsyncpa [#allocation5], 1

</llo_original>
